<compile_context>
chip_gen: v7x
topology: tpu7x:2x2x1
jax: 0.10.0
libtpu: 0.0.40
codegen_flags: <defaults>
</compile_context>

<pallas_src>
import functools

import jax
import jax.numpy as jnp
from jax.experimental import pallas as pl
from jax.experimental.pallas import tpu as pltpu

LANE = 128


def _round_up(n, m):
    return ((n + m - 1) // m) * m


def _pad2d(a, rows, cols, dtype):
    a = jnp.asarray(a)
    out = jnp.pad(a, ((0, rows - a.shape[0]), (0, cols - a.shape[1])))
    return out.astype(dtype)


# ----------------------------------------------------------------------------
# Pallas kernel: full node-embedding pipeline, tiled over (row_tile, k_tile)
# ----------------------------------------------------------------------------
def drnet_kernel(adj_ref, x_ref,
                 w1_ref, b1_ref,
                 wg_ref, bg_ref,
                 w2_ref, b2_ref,
                 w3_ref, b3_ref,
                 out_ref, acc_ref):
    k = pl.program_id(1)

    @pl.when(k == 0)
    def _():
        acc_ref[...] = jnp.zeros_like(acc_ref)

    # Recompute the k-tile of the pre-aggregation features:
    #   H_k = relu(X_k @ W1 + b1) @ Wg       (bf16 inputs, f32 accumulate)
    h1 = jnp.dot(x_ref[...], w1_ref[...], preferred_element_type=jnp.float32)
    h1 = jnp.maximum(h1 + b1_ref[...], 0.0)
    hg_pre = jnp.dot(h1.astype(jnp.bfloat16), wg_ref[...],
                     preferred_element_type=jnp.float32)

    # Streamed GCN aggregation: acc += A_norm[i_tile, k_tile] @ H_k
    acc_ref[...] += jnp.dot(adj_ref[...], hg_pre.astype(jnp.bfloat16),
                            preferred_element_type=jnp.float32)

    # Finalize: GCN bias+ReLU, then the 2-layer MLP head, once per row tile.
    @pl.when(k == pl.num_programs(1) - 1)
    def _():
        hg = jnp.maximum(acc_ref[...] + bg_ref[...], 0.0)
        h2 = jnp.dot(hg.astype(jnp.bfloat16), w2_ref[...],
                     preferred_element_type=jnp.float32)
        h2 = jnp.maximum(h2 + b2_ref[...], 0.0)
        out = jnp.dot(h2.astype(jnp.bfloat16), w3_ref[...],
                      preferred_element_type=jnp.float32)
        out_ref[...] = (out + b3_ref[...]).astype(out_ref.dtype)


@functools.partial(jax.jit, static_argnames=("tm", "tk"))
def drnet_node_embeddings(x, adj_norm, params, *, tm=64, tk=128):
    n_nodes, input_dim = x.shape
    hidden_dim = params["w1"].shape[1]
    hidden2 = params["w2"].shape[1]
    output_dim = params["w3"].shape[1]

    # Lane-aligned padded feature dims (zero padding => exact math mod bf16).
    fp = _round_up(input_dim, LANE)
    hp = _round_up(hidden_dim, LANE)
    h2p = _round_up(hidden2, LANE)
    op = _round_up(output_dim, LANE)

    # tm | tk so one node-count padding serves both grid axes.
    assert tk % tm == 0 and tm % 8 == 0 and tk % LANE == 0
    np_ = _round_up(n_nodes, tk)

    x_p = _pad2d(x, np_, fp, jnp.bfloat16)
    adj_p = _pad2d(adj_norm, np_, np_, jnp.bfloat16)
    w1 = _pad2d(params["w1"], fp, hp, jnp.bfloat16)
    b1 = _pad2d(params["b1"], 1, hp, jnp.float32)
    wg = _pad2d(params["wg"], hp, hp, jnp.bfloat16)
    bg = _pad2d(params["bg"], 1, hp, jnp.float32)
    w2 = _pad2d(params["w2"], hp, h2p, jnp.bfloat16)
    b2 = _pad2d(params["b2"], 1, h2p, jnp.float32)
    w3 = _pad2d(params["w3"], h2p, op, jnp.bfloat16)
    b3 = _pad2d(params["b3"], 1, op, jnp.float32)

    gi, gk = np_ // tm, np_ // tk

    flops = (
        gi * gk * 2 * (tk * fp * hp + tk * hp * hp + tm * tk * hp)
        + gi * 2 * (tm * hp * h2p + tm * h2p * op)
    )
    bytes_accessed = (
        np_ * np_ * 2                     # A_norm streamed once (bf16)
        + gi * np_ * fp * 2               # X re-streamed per row tile (bf16)
        + 2 * (fp * hp + hp * hp + hp * h2p + h2p * op)   # weights (bf16)
        + 4 * (2 * hp + h2p + op)                         # biases (f32)
        + np_ * op * 4                                    # output (f32)
    )

    const = lambda i, k: (0, 0)
    kernel = pl.pallas_call(
        drnet_kernel,
        out_shape=jax.ShapeDtypeStruct((np_, op), jnp.float32),
        grid=(gi, gk),
        in_specs=[
            pl.BlockSpec((tm, tk), lambda i, k: (i, k)),    # A_norm tile
            pl.BlockSpec((tk, fp), lambda i, k: (k, 0)),    # X k-tile
            pl.BlockSpec((fp, hp), const),                  # W1
            pl.BlockSpec((1, hp), const),                   # b1
            pl.BlockSpec((hp, hp), const),                  # Wg
            pl.BlockSpec((1, hp), const),                   # bg
            pl.BlockSpec((hp, h2p), const),                 # W2
            pl.BlockSpec((1, h2p), const),                  # b2
            pl.BlockSpec((h2p, op), const),                 # W3
            pl.BlockSpec((1, op), const),                   # b3
        ],
        out_specs=pl.BlockSpec((tm, op), lambda i, k: (i, 0)),
        scratch_shapes=[pltpu.VMEM((tm, hp), jnp.float32)],
        compiler_params=pltpu.CompilerParams(
            dimension_semantics=("parallel", "arbitrary"),
            vmem_limit_bytes=48 * 1024 * 1024,
        ),
        cost_estimate=pl.CostEstimate(
            flops=flops, transcendentals=0, bytes_accessed=bytes_accessed),
    )
    out = kernel(adj_p, x_p, w1, b1, wg, bg, w2, b2, w3, b3)
    return out[:n_nodes, :output_dim]


# ----------------------------------------------------------------------------
# Plain-JAX glue
# ----------------------------------------------------------------------------
def build_gcn_adjacency(edge_index, num_nodes):
    """Dense normalized adjacency D^-1/2 (A + I) D^-1/2 (PyG GCNConv norm).

    Duplicate edges are counted (scatter-add) and self-loops are only added
    for nodes that do not already have one (add_remaining_self_loops).
    """
    src, dst = edge_index[0], edge_index[1]
    a = jnp.zeros((num_nodes, num_nodes), jnp.float32)
    a = a.at[dst, src].add(1.0)                            # message src -> dst
    diag = jnp.diagonal(a)
    a = a + jnp.diag(jnp.where(diag > 0.0, 0.0, 1.0))      # remaining self-loops
    deg = jnp.sum(a, axis=1)                               # weighted in-degree
    dinv = jnp.where(deg > 0, jax.lax.rsqrt(deg), 0.0)
    return a * dinv[:, None] * dinv[None, :]


def drnet_forward(data, params):
    """Mirrors DRNetwork.forward for the single-graph path."""
    adj_norm = build_gcn_adjacency(data["edge_index"], data["x"].shape[0])
    node_emb = drnet_node_embeddings(data["x"], adj_norm, params)
    # TODO(synk): batched multi-graph pair-index offsetting (data.batch branch)
    # not implemented; this is the `else` (single-graph) path of forward().
    first = jnp.take(node_emb, data["pair_idxs_left"], axis=0)
    second = jnp.take(node_emb, data["pair_idxs_right"], axis=0)
    pair_embeddings = jnp.stack([first, second])           # (2, P, output_dim)
    return pair_embeddings, data["y"]


def drnet_reference_embeddings(x, adj_norm, params):
    """Pure-JAX f32 reference for numerical validation."""
    h = jax.nn.relu(x @ params["w1"] + params["b1"])
    hg = jax.nn.relu(adj_norm @ (h @ params["wg"]) + params["bg"])
    h2 = jax.nn.relu(hg @ params["w2"] + params["b2"])
    return h2 @ params["w3"] + params["b3"]


def init_params(key, input_dim, hidden_dim, output_dim):
    ks = jax.random.split(key, 8)

    def lin(kw, kb, fan_in, fan_out):
        bound = 1.0 / jnp.sqrt(fan_in)
        w = jax.random.uniform(kw, (fan_in, fan_out), jnp.float32, -bound, bound)
        b = jax.random.uniform(kb, (1, fan_out), jnp.float32, -bound, bound)
        return w, b

    w1, b1 = lin(ks[0], ks[1], input_dim, hidden_dim)
    wg, bg = lin(ks[2], ks[3], hidden_dim, hidden_dim)
    w2, b2 = lin(ks[4], ks[5], hidden_dim, 2 * hidden_dim)
    w3, b3 = lin(ks[6], ks[7], 2 * hidden_dim, output_dim)
    return dict(w1=w1, b1=b1, wg=wg, bg=bg, w2=w2, b2=b2, w3=w3, b3=b3)


# ----------------------------------------------------------------------------
if __name__ == "__main__":
    key = jax.random.PRNGKey(0)
    k_x, k_p, k_y = jax.random.split(key, 3)

    N_NODES, INPUT_DIM, HIDDEN_DIM, OUTPUT_DIM = 16, 8, 32, 16
    N_PAIRS = 8

    # Node features
    x = jax.random.normal(k_x, (N_NODES, INPUT_DIM), jnp.float32)

    # Ring graph edges (bidirectional), edge_index shape (2, E)
    src = jnp.arange(N_NODES, dtype=jnp.int32)
    dst = (src + 1) % N_NODES
    edge_index = jnp.concatenate(
        [jnp.stack([src, dst]), jnp.stack([dst, src])], axis=1)

    # Pair indices and labels
    pair_left = jnp.arange(N_PAIRS, dtype=jnp.int32)
    pair_right = (pair_left + N_PAIRS) % N_NODES
    y = jax.random.normal(k_y, (N_PAIRS,), jnp.float32)

    data = dict(x=x, edge_index=edge_index,
                pair_idxs_left=pair_left, pair_idxs_right=pair_right, y=y)

    params = init_params(k_p, INPUT_DIM, HIDDEN_DIM, OUTPUT_DIM)

    pair_embeddings, y_out = drnet_forward(data, params)
    jax.block_until_ready(pair_embeddings)
    jax.block_until_ready(y_out)

    assert pair_embeddings.shape == (2, N_PAIRS, OUTPUT_DIM)
    assert y_out.shape == (N_PAIRS,)

    # Numerical check against a pure-JAX f32 reference (bf16 matmul tolerance).
    adj_norm = build_gcn_adjacency(edge_index, N_NODES)
    node_emb = drnet_node_embeddings(x, adj_norm, params)
    ref_emb = drnet_reference_embeddings(x, adj_norm, params)
    jax.block_until_ready(node_emb)
    max_err = float(jnp.max(jnp.abs(node_emb - ref_emb)))
    assert max_err < 5e-2, f"max abs error vs reference too large: {max_err}"

    print("KERNEL_OK")
</pallas_src>

<mosaic_0001>
module attributes {stable_mosaic.version = 11 : i64} {
  func.func @drnet_kernel(%arg0: i32, %arg1: i32, %arg2: memref<64x128xbf16, #tpu.memory_space<vmem>>, %arg3: memref<128x128xbf16, #tpu.memory_space<vmem>>, %arg4: memref<128x128xbf16, #tpu.memory_space<vmem>>, %arg5: memref<1x128xf32, #tpu.memory_space<vmem>>, %arg6: memref<128x128xbf16, #tpu.memory_space<vmem>>, %arg7: memref<1x128xf32, #tpu.memory_space<vmem>>, %arg8: memref<128x128xbf16, #tpu.memory_space<vmem>>, %arg9: memref<1x128xf32, #tpu.memory_space<vmem>>, %arg10: memref<128x128xbf16, #tpu.memory_space<vmem>>, %arg11: memref<1x128xf32, #tpu.memory_space<vmem>>, %arg12: memref<64x128xf32, #tpu.memory_space<vmem>>, %arg13: memref<64x128xf32, #tpu.memory_space<vmem>>) attributes {dimension_semantics = [#tpu.dimension_semantics<parallel>, #tpu.dimension_semantics<arbitrary>], iteration_bounds = array<i64: 2, 1>, scalar_prefetch = 0 : i64, scratch_operands = 1 : i64, tpu.core_type = #tpu.core_type<tc>, window_params = [{transform_indices = @transform_0, window_bounds = array<i64: 64, 128>}, {transform_indices = @transform_1, window_bounds = array<i64: 128, 128>}, {pipeline_mode = #tpu.pipeline_mode<synchronous>, transform_indices = @transform_2, window_bounds = array<i64: 128, 128>}, {pipeline_mode = #tpu.pipeline_mode<synchronous>, transform_indices = @transform_3, window_bounds = array<i64: 1, 128>}, {pipeline_mode = #tpu.pipeline_mode<synchronous>, transform_indices = @transform_4, window_bounds = array<i64: 128, 128>}, {pipeline_mode = #tpu.pipeline_mode<synchronous>, transform_indices = @transform_5, window_bounds = array<i64: 1, 128>}, {pipeline_mode = #tpu.pipeline_mode<synchronous>, transform_indices = @transform_6, window_bounds = array<i64: 128, 128>}, {pipeline_mode = #tpu.pipeline_mode<synchronous>, transform_indices = @transform_7, window_bounds = array<i64: 1, 128>}, {pipeline_mode = #tpu.pipeline_mode<synchronous>, transform_indices = @transform_8, window_bounds = array<i64: 128, 128>}, {pipeline_mode = #tpu.pipeline_mode<synchronous>, transform_indices = @transform_9, window_bounds = array<i64: 1, 128>}, {transform_indices = @transform_10, window_bounds = array<i64: 64, 128>}]} {
    %c0_i32 = arith.constant 0 : i32
    %0 = arith.cmpi eq, %arg1, %c0_i32 : i32
    %1 = arith.extui %0 : i1 to i32
    %c0_i32_0 = arith.constant 0 : i32
    %2 = arith.cmpi ne, %1, %c0_i32_0 : i32
    scf.if %2 {
      %cst_19 = arith.constant 0.000000e+00 : f32
      %23 = vector.broadcast %cst_19 : f32 to vector<64x128xf32>
      %c0_20 = arith.constant 0 : index
      %c0_21 = arith.constant 0 : index
      %24 = vector.load %arg13[%c0_20, %c0_21] : memref<64x128xf32, #tpu.memory_space<vmem>>, vector<64x128xf32>
      tpu.vector_store %arg13[%c0_20, %c0_21], %23 {strides = array<i32>} : memref<64x128xf32, #tpu.memory_space<vmem>>, vector<64x128xf32>,
    } else {
    }
    %c0 = arith.constant 0 : index
    %c0_1 = arith.constant 0 : index
    %3 = vector.load %arg3[%c0, %c0_1] : memref<128x128xbf16, #tpu.memory_space<vmem>>, vector<128x128xbf16>
    %c0_2 = arith.constant 0 : index
    %c0_3 = arith.constant 0 : index
    %4 = vector.load %arg4[%c0_2, %c0_3] : memref<128x128xbf16, #tpu.memory_space<vmem>>, vector<128x128xbf16>
    %cst = arith.constant dense<0.000000e+00> : vector<128x128xf32>
    %5 = tpu.matmul %3, %4, %cst {dimension_numbers = #tpu.dot_dimension_numbers<[1], [0], [0], [1], [0, 0, 1, 1], [], []>} : vector<128x128xbf16>, vector<128x128xbf16>, vector<128x128xf32> -> vector<128x128xf32>
    %c0_4 = arith.constant 0 : index
    %c0_5 = arith.constant 0 : index
    %6 = vector.load %arg5[%c0_4, %c0_5] : memref<1x128xf32, #tpu.memory_space<vmem>>, vector<1x128xf32>
    %7 = vector.broadcast %6 : vector<1x128xf32> to vector<128x128xf32>
    %8 = arith.addf %5, %7 : vector<128x128xf32>
    %cst_6 = arith.constant 0.000000e+00 : f32
    %9 = vector.broadcast %cst_6 : f32 to vector<128x128xf32>
    %10 = arith.maximumf %8, %9 : vector<128x128xf32>
    %11 = arith.truncf %10 : vector<128x128xf32> to vector<128x128xbf16>
    %c0_7 = arith.constant 0 : index
    %c0_8 = arith.constant 0 : index
    %12 = vector.load %arg6[%c0_7, %c0_8] : memref<128x128xbf16, #tpu.memory_space<vmem>>, vector<128x128xbf16>
    %cst_9 = arith.constant dense<0.000000e+00> : vector<128x128xf32>
    %13 = tpu.matmul %11, %12, %cst_9 {dimension_numbers = #tpu.dot_dimension_numbers<[1], [0], [0], [1], [0, 0, 1, 1], [], []>} : vector<128x128xbf16>, vector<128x128xbf16>, vector<128x128xf32> -> vector<128x128xf32>
    %c0_10 = arith.constant 0 : index
    %c0_11 = arith.constant 0 : index
    %14 = vector.load %arg13[%c0_10, %c0_11] : memref<64x128xf32, #tpu.memory_space<vmem>>, vector<64x128xf32>
    %c0_12 = arith.constant 0 : index
    %c0_13 = arith.constant 0 : index
    %15 = vector.load %arg2[%c0_12, %c0_13] : memref<64x128xbf16, #tpu.memory_space<vmem>>, vector<64x128xbf16>
    %16 = arith.truncf %13 : vector<128x128xf32> to vector<128x128xbf16>
    %cst_14 = arith.constant dense<0.000000e+00> : vector<64x128xf32>
    %17 = tpu.matmul %15, %16, %cst_14 {dimension_numbers = #tpu.dot_dimension_numbers<[1], [0], [0], [1], [0, 0, 1, 1], [], []>} : vector<64x128xbf16>, vector<128x128xbf16>, vector<64x128xf32> -> vector<64x128xf32>
    %18 = arith.addf %14, %17 : vector<64x128xf32>
    %c0_15 = arith.constant 0 : index
    %c0_16 = arith.constant 0 : index
    %19 = vector.load %arg13[%c0_15, %c0_16] : memref<64x128xf32, #tpu.memory_space<vmem>>, vector<64x128xf32>
    tpu.vector_store %arg13[%c0_15, %c0_16], %18 {strides = array<i32>} : memref<64x128xf32, #tpu.memory_space<vmem>>, vector<64x128xf32>,
    %c0_i32_17 = arith.constant 0 : i32
    %20 = arith.cmpi eq, %arg1, %c0_i32_17 : i32
    %21 = arith.extui %20 : i1 to i32
    %c0_i32_18 = arith.constant 0 : i32
    %22 = arith.cmpi ne, %21, %c0_i32_18 : i32
    scf.if %22 {
      %c0_19 = arith.constant 0 : index
      %c0_20 = arith.constant 0 : index
      %23 = vector.load %arg13[%c0_19, %c0_20] : memref<64x128xf32, #tpu.memory_space<vmem>>, vector<64x128xf32>
      %c0_21 = arith.constant 0 : index
      %c0_22 = arith.constant 0 : index
      %24 = vector.load %arg7[%c0_21, %c0_22] : memref<1x128xf32, #tpu.memory_space<vmem>>, vector<1x128xf32>
      %25 = vector.broadcast %24 : vector<1x128xf32> to vector<64x128xf32>
      %26 = arith.addf %23, %25 : vector<64x128xf32>
      %cst_23 = arith.constant 0.000000e+00 : f32
      %27 = vector.broadcast %cst_23 : f32 to vector<64x128xf32>
      %28 = arith.maximumf %26, %27 : vector<64x128xf32>
      %29 = arith.truncf %28 : vector<64x128xf32> to vector<64x128xbf16>
      %c0_24 = arith.constant 0 : index
      %c0_25 = arith.constant 0 : index
      %30 = vector.load %arg8[%c0_24, %c0_25] : memref<128x128xbf16, #tpu.memory_space<vmem>>, vector<128x128xbf16>
      %cst_26 = arith.constant dense<0.000000e+00> : vector<64x128xf32>
      %31 = tpu.matmul %29, %30, %cst_26 {dimension_numbers = #tpu.dot_dimension_numbers<[1], [0], [0], [1], [0, 0, 1, 1], [], []>} : vector<64x128xbf16>, vector<128x128xbf16>, vector<64x128xf32> -> vector<64x128xf32>
      %c0_27 = arith.constant 0 : index
      %c0_28 = arith.constant 0 : index
      %32 = vector.load %arg9[%c0_27, %c0_28] : memref<1x128xf32, #tpu.memory_space<vmem>>, vector<1x128xf32>
      %33 = vector.broadcast %32 : vector<1x128xf32> to vector<64x128xf32>
      %34 = arith.addf %31, %33 : vector<64x128xf32>
      %cst_29 = arith.constant 0.000000e+00 : f32
      %35 = vector.broadcast %cst_29 : f32 to vector<64x128xf32>
      %36 = arith.maximumf %34, %35 : vector<64x128xf32>
      %37 = arith.truncf %36 : vector<64x128xf32> to vector<64x128xbf16>
      %c0_30 = arith.constant 0 : index
      %c0_31 = arith.constant 0 : index
      %38 = vector.load %arg10[%c0_30, %c0_31] : memref<128x128xbf16, #tpu.memory_space<vmem>>, vector<128x128xbf16>
      %cst_32 = arith.constant dense<0.000000e+00> : vector<64x128xf32>
      %39 = tpu.matmul %37, %38, %cst_32 {dimension_numbers = #tpu.dot_dimension_numbers<[1], [0], [0], [1], [0, 0, 1, 1], [], []>} : vector<64x128xbf16>, vector<128x128xbf16>, vector<64x128xf32> -> vector<64x128xf32>
      %c0_33 = arith.constant 0 : index
      %c0_34 = arith.constant 0 : index
      %40 = vector.load %arg11[%c0_33, %c0_34] : memref<1x128xf32, #tpu.memory_space<vmem>>, vector<1x128xf32>
      %41 = vector.broadcast %40 : vector<1x128xf32> to vector<64x128xf32>
      %42 = arith.addf %39, %41 : vector<64x128xf32>
      %c0_35 = arith.constant 0 : index
      %c0_36 = arith.constant 0 : index
      %43 = vector.load %arg12[%c0_35, %c0_36] : memref<64x128xf32, #tpu.memory_space<vmem>>, vector<64x128xf32>
      tpu.vector_store %arg12[%c0_35, %c0_36], %42 {strides = array<i32>} : memref<64x128xf32, #tpu.memory_space<vmem>>, vector<64x128xf32>,
    } else {
    }
    return
  }
  func.func @transform_0(%arg0: i32, %arg1: i32) -> (i32, i32) {
    %c0_i32 = arith.constant 0 : i32
    return %arg0, %arg1 : i32, i32
  }
  func.func @transform_1(%arg0: i32, %arg1: i32) -> (i32, i32) {
    %c0_i32 = arith.constant 0 : i32
    %c0_i32_0 = arith.constant 0 : i32
    return %arg1, %c0_i32 : i32, i32
  }
  func.func @transform_2(%arg0: i32, %arg1: i32) -> (i32, i32) {
    %c0_i32 = arith.constant 0 : i32
    %c0_i32_0 = arith.constant 0 : i32
    %c0_i32_1 = arith.constant 0 : i32
    return %c0_i32, %c0_i32_0 : i32, i32
  }
  func.func @transform_3(%arg0: i32, %arg1: i32) -> (i32, i32) {
    %c0_i32 = arith.constant 0 : i32
    %c0_i32_0 = arith.constant 0 : i32
    %c0_i32_1 = arith.constant 0 : i32
    return %c0_i32, %c0_i32_0 : i32, i32
  }
  func.func @transform_4(%arg0: i32, %arg1: i32) -> (i32, i32) {
    %c0_i32 = arith.constant 0 : i32
    %c0_i32_0 = arith.constant 0 : i32
    %c0_i32_1 = arith.constant 0 : i32
    return %c0_i32, %c0_i32_0 : i32, i32
  }
  func.func @transform_5(%arg0: i32, %arg1: i32) -> (i32, i32) {
    %c0_i32 = arith.constant 0 : i32
    %c0_i32_0 = arith.constant 0 : i32
    %c0_i32_1 = arith.constant 0 : i32
    return %c0_i32, %c0_i32_0 : i32, i32
  }
  func.func @transform_6(%arg0: i32, %arg1: i32) -> (i32, i32) {
    %c0_i32 = arith.constant 0 : i32
    %c0_i32_0 = arith.constant 0 : i32
    %c0_i32_1 = arith.constant 0 : i32
    return %c0_i32, %c0_i32_0 : i32, i32
  }
  func.func @transform_7(%arg0: i32, %arg1: i32) -> (i32, i32) {
    %c0_i32 = arith.constant 0 : i32
    %c0_i32_0 = arith.constant 0 : i32
    %c0_i32_1 = arith.constant 0 : i32
    return %c0_i32, %c0_i32_0 : i32, i32
  }
  func.func @transform_8(%arg0: i32, %arg1: i32) -> (i32, i32) {
    %c0_i32 = arith.constant 0 : i32
    %c0_i32_0 = arith.constant 0 : i32
    %c0_i32_1 = arith.constant 0 : i32
    return %c0_i32, %c0_i32_0 : i32, i32
  }
  func.func @transform_9(%arg0: i32, %arg1: i32) -> (i32, i32) {
    %c0_i32 = arith.constant 0 : i32
    %c0_i32_0 = arith.constant 0 : i32
    %c0_i32_1 = arith.constant 0 : i32
    return %c0_i32, %c0_i32_0 : i32, i32
  }
  func.func @transform_10(%arg0: i32, %arg1: i32) -> (i32, i32) {
    %c0_i32 = arith.constant 0 : i32
    %c0_i32_0 = arith.constant 0 : i32
    return %arg0, %c0_i32 : i32, i32
  }
}

</mosaic_0001>

<llo_original>
// kernel: drnet_node_embeddings.1
$region0: #{drnet_node_embeddings.1}
  #allocation0 [shape = 'u32[]', space=smem, size = 0x4, offset = 0x4, fixed_abs, tag = 'smem constant byte address 0x4 - core index']
  #allocation1 [shape = 'u32[144,128]{1,0:T(1,128)}', space=vmem, size = 0x12000, scoped, tag = 'internal scratch']
  #allocation2 [shape = 'f32[64,128]{1,0:T(8,128)}', space=vmem, size = 0x8000, scoped, tag = 'scratch operand']
  %s0 = inlined_call_operand.vmem [shape: bf16[128,128], index: 0, kind: input, shape index: {}]
  %s1 = inlined_call_operand.vmem [shape: bf16[128,128], index: 1, kind: input, shape index: {}]
  %s2 = inlined_call_operand.vmem [shape: bf16[128,128], index: 2, kind: input, shape index: {}]
  %s3 = inlined_call_operand.vmem [shape: f32[1,128], index: 3, kind: input, shape index: {}]
  %s4 = inlined_call_operand.vmem [shape: bf16[128,128], index: 4, kind: input, shape index: {}]
  %s5 = inlined_call_operand.vmem [shape: f32[1,128], index: 5, kind: input, shape index: {}]
  %s6 = inlined_call_operand.vmem [shape: bf16[128,128], index: 6, kind: input, shape index: {}]
  %s7 = inlined_call_operand.vmem [shape: f32[1,128], index: 7, kind: input, shape index: {}]
  %s8 = inlined_call_operand.vmem [shape: bf16[128,128], index: 8, kind: input, shape index: {}]
  %s9 = inlined_call_operand.vmem [shape: f32[1,128], index: 9, kind: input, shape index: {}]
  %s10 = inlined_call_operand.vmem [shape: f32[128,128], index: 10, kind: output, shape index: {}]
  %s11 = sld [smem:[#allocation0]]
  $region81: #{drnet_node_embeddings.1} parent=0
    _
  %s13 = ssub.s32 1, %s11
  %s14 = scalar_select 0, %s13, %s11
  loop: start=0, step=1, limit=4
  $region2: #{drnet_node_embeddings.1} parent=0 // loop_pre_header
    _
  $region3: #{drnet_node_embeddings.1} parent=0 // loop_header
    %s16 = sphi 0, %s20
    %p17 = scmp.ge.s32.totalorder %s16, 4
    %s23 = sphi 0, %s35
    %s24 = sphi 0, %s31
    %s25 = sphi 0, %s23
    %s26 = sphi 0, %s24
    %s27 = sphi 0, %s25
    %s28 = sphi 0, %s26
    %s40 = sphi 0, %s42
    %s43 = sphi 0, %s40
    %s44 = sphi 0, %s43
    %s60 = sphi 0, %s44
    %s66 = sphi 0, %s68
    %s69 = sphi 0, %s66
    %s70 = sphi 0, %s69
    %s86 = sphi 0, %s70
    %s90 = sphi 0, %s90
    %s92 = sphi 0, %s90
    %s93 = sphi 0, %s92
    %s107 = sphi 0, %s93
    %s111 = sphi 0, %s111
    %s113 = sphi 0, %s111
    %s114 = sphi 0, %s113
    %s128 = sphi 0, %s114
    %s132 = sphi 0, %s132
    %s134 = sphi 0, %s132
    %s135 = sphi 0, %s134
    %s149 = sphi 0, %s135
    %s153 = sphi 0, %s153
    %s155 = sphi 0, %s153
    %s156 = sphi 0, %s155
    %s170 = sphi 0, %s156
    %s174 = sphi 0, %s174
    %s176 = sphi 0, %s174
    %s177 = sphi 0, %s176
    %s191 = sphi 0, %s177
    %s195 = sphi 0, %s195
    %s197 = sphi 0, %s195
    %s198 = sphi 0, %s197
    %s212 = sphi 0, %s198
    %s216 = sphi 0, %s216
    %s218 = sphi 0, %s216
    %s219 = sphi 0, %s218
    %s233 = sphi 0, %s219
    %s237 = sphi 0, %s237
    %s239 = sphi 0, %s237
    %s240 = sphi 0, %s239
    %s254 = sphi 0, %s240
    %s260 = sphi 0, %s262
    %s263 = sphi 0, %s260
    %s264 = sphi 0, %s263
    %s280 = sphi 0, %s264
  $region4: #{drnet_node_embeddings.1} parent=0 // loop_header_branch
    %19 = sbr.rel (%p17) target = $region8
  $region5: #{drnet_node_embeddings.1} parent=0 // loop_body
    %s21 = ssub.s32 %s16, 1
    %s22 = ssub.s32 %s16, 2
    %s29 = sadd.s32 1, %s24
    %p30 = scmp.ge.s32.totalorder %s29, 1
    %s31 = scalar_select %p30, 0, %s29
    %s32 = sadd.s32 1, %s23
    %s33 = scalar_select %p30, %s32, %s23
    %p34 = scmp.ge.s32.totalorder %s33, 2
    %s35 = scalar_select %p34, 0, %s33
    %s36 = ssub.s32 %s23, %s35
    %s37 = ssub.s32 %s24, %s31
    %s38 = sor.u32 %s36, %s37
    %p39 = scmp.eq.s32.totalorder %s38, 0
    %s41 = sadd.s32 %s40, 1
    %s42 = scalar_select %p39, %s40, %s41
    %p45 = pneg %p39
    %p46 = scmp.eq.s32.totalorder %s16, 1
    %p47 = por %p45, %p46
    %p48 = scmp.ne.s32.totalorder %s40, %s43
    %p49 = scmp.eq.s32.totalorder %s16, 0
    %p50 = por %p48, %p49
    %p51 = scmp.ne.s32.totalorder %s40, %s43
    %p52 = scmp.eq.s32.totalorder %s21, 1
    %p53 = por %p51, %p52
    %p54 = scmp.ne.s32.totalorder %s43, %s44
    %p55 = scmp.eq.s32.totalorder %s21, 0
    %p56 = por %p54, %p55
    %p57 = scmp.ne.s32.totalorder %s43, %s44
    %p58 = scmp.eq.s32.totalorder %s22, 1
    %p59 = por %p57, %p58
    %p61 = scmp.ne.s32.totalorder %s44, %s60
    %p62 = scmp.eq.s32.totalorder %s22, 0
    %p63 = por %p61, %p62
    %s64 = ssub.s32 %s24, %s31
    %p65 = scmp.eq.s32.totalorder %s64, 0
    %s67 = sadd.s32 %s66, 1
    %s68 = scalar_select %p65, %s66, %s67
    %p71 = pneg %p65
    %p72 = scmp.eq.s32.totalorder %s16, 1
    %p73 = por %p71, %p72
    %p74 = scmp.ne.s32.totalorder %s66, %s69
    %p75 = scmp.eq.s32.totalorder %s16, 0
    %p76 = por %p74, %p75
    %p77 = scmp.ne.s32.totalorder %s66, %s69
    %p78 = scmp.eq.s32.totalorder %s21, 1
    %p79 = por %p77, %p78
    %p80 = scmp.ne.s32.totalorder %s69, %s70
    %p81 = scmp.eq.s32.totalorder %s21, 0
    %p82 = por %p80, %p81
    %p83 = scmp.ne.s32.totalorder %s69, %s70
    %p84 = scmp.eq.s32.totalorder %s22, 1
    %p85 = por %p83, %p84
    %p87 = scmp.ne.s32.totalorder %s70, %s86
    %p88 = scmp.eq.s32.totalorder %s22, 0
    %p89 = por %p87, %p88
    %s91 = sadd.s32 %s90, 1
    %p94 = scmp.eq.s32.totalorder %s16, 1
    %p95 = scmp.ne.s32.totalorder %s90, %s92
    %p96 = scmp.eq.s32.totalorder %s16, 0
    %p97 = por %p95, %p96
    %p98 = scmp.ne.s32.totalorder %s90, %s92
    %p99 = scmp.eq.s32.totalorder %s21, 1
    %p100 = por %p98, %p99
    %p101 = scmp.ne.s32.totalorder %s92, %s93
    %p102 = scmp.eq.s32.totalorder %s21, 0
    %p103 = por %p101, %p102
    %p104 = scmp.ne.s32.totalorder %s92, %s93
    %p105 = scmp.eq.s32.totalorder %s22, 1
    %p106 = por %p104, %p105
    %p108 = scmp.ne.s32.totalorder %s93, %s107
    %p109 = scmp.eq.s32.totalorder %s22, 0
    %p110 = por %p108, %p109
    %s112 = sadd.s32 %s111, 1
    %p115 = scmp.eq.s32.totalorder %s16, 1
    %p116 = scmp.ne.s32.totalorder %s111, %s113
    %p117 = scmp.eq.s32.totalorder %s16, 0
    %p118 = por %p116, %p117
    %p119 = scmp.ne.s32.totalorder %s111, %s113
    %p120 = scmp.eq.s32.totalorder %s21, 1
    %p121 = por %p119, %p120
    %p122 = scmp.ne.s32.totalorder %s113, %s114
    %p123 = scmp.eq.s32.totalorder %s21, 0
    %p124 = por %p122, %p123
    %p125 = scmp.ne.s32.totalorder %s113, %s114
    %p126 = scmp.eq.s32.totalorder %s22, 1
    %p127 = por %p125, %p126
    %p129 = scmp.ne.s32.totalorder %s114, %s128
    %p130 = scmp.eq.s32.totalorder %s22, 0
    %p131 = por %p129, %p130
    %s133 = sadd.s32 %s132, 1
    %p136 = scmp.eq.s32.totalorder %s16, 1
    %p137 = scmp.ne.s32.totalorder %s132, %s134
    %p138 = scmp.eq.s32.totalorder %s16, 0
    %p139 = por %p137, %p138
    %p140 = scmp.ne.s32.totalorder %s132, %s134
    %p141 = scmp.eq.s32.totalorder %s21, 1
    %p142 = por %p140, %p141
    %p143 = scmp.ne.s32.totalorder %s134, %s135
    %p144 = scmp.eq.s32.totalorder %s21, 0
    %p145 = por %p143, %p144
    %p146 = scmp.ne.s32.totalorder %s134, %s135
    %p147 = scmp.eq.s32.totalorder %s22, 1
    %p148 = por %p146, %p147
    %p150 = scmp.ne.s32.totalorder %s135, %s149
    %p151 = scmp.eq.s32.totalorder %s22, 0
    %p152 = por %p150, %p151
    %s154 = sadd.s32 %s153, 1
    %p157 = scmp.eq.s32.totalorder %s16, 1
    %p158 = scmp.ne.s32.totalorder %s153, %s155
    %p159 = scmp.eq.s32.totalorder %s16, 0
    %p160 = por %p158, %p159
    %p161 = scmp.ne.s32.totalorder %s153, %s155
    %p162 = scmp.eq.s32.totalorder %s21, 1
    %p163 = por %p161, %p162
    %p164 = scmp.ne.s32.totalorder %s155, %s156
    %p165 = scmp.eq.s32.totalorder %s21, 0
    %p166 = por %p164, %p165
    %p167 = scmp.ne.s32.totalorder %s155, %s156
    %p168 = scmp.eq.s32.totalorder %s22, 1
    %p169 = por %p167, %p168
    %p171 = scmp.ne.s32.totalorder %s156, %s170
    %p172 = scmp.eq.s32.totalorder %s22, 0
    %p173 = por %p171, %p172
    %s175 = sadd.s32 %s174, 1
    %p178 = scmp.eq.s32.totalorder %s16, 1
    %p179 = scmp.ne.s32.totalorder %s174, %s176
    %p180 = scmp.eq.s32.totalorder %s16, 0
    %p181 = por %p179, %p180
    %p182 = scmp.ne.s32.totalorder %s174, %s176
    %p183 = scmp.eq.s32.totalorder %s21, 1
    %p184 = por %p182, %p183
    %p185 = scmp.ne.s32.totalorder %s176, %s177
    %p186 = scmp.eq.s32.totalorder %s21, 0
    %p187 = por %p185, %p186
    %p188 = scmp.ne.s32.totalorder %s176, %s177
    %p189 = scmp.eq.s32.totalorder %s22, 1
    %p190 = por %p188, %p189
    %p192 = scmp.ne.s32.totalorder %s177, %s191
    %p193 = scmp.eq.s32.totalorder %s22, 0
    %p194 = por %p192, %p193
    %s196 = sadd.s32 %s195, 1
    %p199 = scmp.eq.s32.totalorder %s16, 1
    %p200 = scmp.ne.s32.totalorder %s195, %s197
    %p201 = scmp.eq.s32.totalorder %s16, 0
    %p202 = por %p200, %p201
    %p203 = scmp.ne.s32.totalorder %s195, %s197
    %p204 = scmp.eq.s32.totalorder %s21, 1
    %p205 = por %p203, %p204
    %p206 = scmp.ne.s32.totalorder %s197, %s198
    %p207 = scmp.eq.s32.totalorder %s21, 0
    %p208 = por %p206, %p207
    %p209 = scmp.ne.s32.totalorder %s197, %s198
    %p210 = scmp.eq.s32.totalorder %s22, 1
    %p211 = por %p209, %p210
    %p213 = scmp.ne.s32.totalorder %s198, %s212
    %p214 = scmp.eq.s32.totalorder %s22, 0
    %p215 = por %p213, %p214
    %s217 = sadd.s32 %s216, 1
    %p220 = scmp.eq.s32.totalorder %s16, 1
    %p221 = scmp.ne.s32.totalorder %s216, %s218
    %p222 = scmp.eq.s32.totalorder %s16, 0
    %p223 = por %p221, %p222
    %p224 = scmp.ne.s32.totalorder %s216, %s218
    %p225 = scmp.eq.s32.totalorder %s21, 1
    %p226 = por %p224, %p225
    %p227 = scmp.ne.s32.totalorder %s218, %s219
    %p228 = scmp.eq.s32.totalorder %s21, 0
    %p229 = por %p227, %p228
    %p230 = scmp.ne.s32.totalorder %s218, %s219
    %p231 = scmp.eq.s32.totalorder %s22, 1
    %p232 = por %p230, %p231
    %p234 = scmp.ne.s32.totalorder %s219, %s233
    %p235 = scmp.eq.s32.totalorder %s22, 0
    %p236 = por %p234, %p235
    %s238 = sadd.s32 %s237, 1
    %p241 = scmp.eq.s32.totalorder %s16, 1
    %p242 = scmp.ne.s32.totalorder %s237, %s239
    %p243 = scmp.eq.s32.totalorder %s16, 0
    %p244 = por %p242, %p243
    %p245 = scmp.ne.s32.totalorder %s237, %s239
    %p246 = scmp.eq.s32.totalorder %s21, 1
    %p247 = por %p245, %p246
    %p248 = scmp.ne.s32.totalorder %s239, %s240
    %p249 = scmp.eq.s32.totalorder %s21, 0
    %p250 = por %p248, %p249
    %p251 = scmp.ne.s32.totalorder %s239, %s240
    %p252 = scmp.eq.s32.totalorder %s22, 1
    %p253 = por %p251, %p252
    %p255 = scmp.ne.s32.totalorder %s240, %s254
    %p256 = scmp.eq.s32.totalorder %s22, 0
    %p257 = por %p255, %p256
    %s258 = ssub.s32 %s23, %s35
    %p259 = scmp.eq.s32.totalorder %s258, 0
    %s261 = sadd.s32 %s260, 1
    %s262 = scalar_select %p259, %s260, %s261
    %p265 = pneg %p259
    %p266 = scmp.eq.s32.totalorder %s16, 1
    %p267 = por %p265, %p266
    %p268 = scmp.ne.s32.totalorder %s260, %s263
    %p269 = scmp.eq.s32.totalorder %s16, 0
    %p270 = por %p268, %p269
    %p271 = scmp.ne.s32.totalorder %s260, %s263
    %p272 = scmp.eq.s32.totalorder %s21, 1
    %p273 = por %p271, %p272
    %p274 = scmp.ne.s32.totalorder %s263, %s264
    %p275 = scmp.eq.s32.totalorder %s21, 0
    %p276 = por %p274, %p275
    %p277 = scmp.ne.s32.totalorder %s263, %s264
    %p278 = scmp.eq.s32.totalorder %s22, 1
    %p279 = por %p277, %p278
    %p281 = scmp.ne.s32.totalorder %s264, %s280
    %p282 = scmp.eq.s32.totalorder %s22, 0
    %p283 = por %p281, %p282
    %p284 = scmp.le.s32.totalorder 1, %s16
    %p285 = scmp.lt.s32.totalorder %s16, 3
    %p286 = pnand %p284, %p285
    %p287 = pneg %p286
    // Predicated region
    $region9: #{drnet_node_embeddings.1} parent=5 // pred_check
      _
    $region10: #{drnet_node_embeddings.1} parent=5 // pred_check_branch
      %289 = sbr.rel (%p286) target = $region12
    $region11: #{drnet_node_embeddings.1} parent=5 // pred_region
      %s290 = ssub.s32 %s16, 1
      // Predicated region
      $region13: #{drnet_node_embeddings.1} parent=11 // pred_check
        %p291 = pneg %p82
      $region14: #{drnet_node_embeddings.1} parent=11 // pred_check_branch
        %293 = sbr.rel (%p291) target = $region16
      $region15: #{drnet_node_embeddings.1} parent=11 // pred_region
        %s294 = smul.u32 16, %s26
        %p295 = scmp.lt.s32.totalorder %s294, 15
        %s296 = scalar_select %p295, %s294, 15
        %s297 = smul.addr %s296, 4
        %s298 = scalar_lea.vmem %s1, %s297
        %s299 = smul.u32 16, %s26
      $region16: #{drnet_node_embeddings.1} parent=11 // pred_fallthru
        _
      // Predicated region
      $region17: #{drnet_node_embeddings.1} parent=11 // pred_check
        %p300 = pneg %p103
      $region18: #{drnet_node_embeddings.1} parent=11 // pred_check_branch
        %302 = sbr.rel (%p300) target = $region20
      $region19: #{drnet_node_embeddings.1} parent=11 // pred_region
        _
      $region20: #{drnet_node_embeddings.1} parent=11 // pred_fallthru
        _
      // Predicated region
      $region21: #{drnet_node_embeddings.1} parent=11 // pred_check
        %p303 = pneg %p124
      $region22: #{drnet_node_embeddings.1} parent=11 // pred_check_branch
        %305 = sbr.rel (%p303) target = $region24
      $region23: #{drnet_node_embeddings.1} parent=11 // pred_region
        _
      $region24: #{drnet_node_embeddings.1} parent=11 // pred_fallthru
        _
      // Predicated region
      $region25: #{drnet_node_embeddings.1} parent=11 // pred_check
        %p306 = pneg %p145
      $region26: #{drnet_node_embeddings.1} parent=11 // pred_check_branch
        %308 = sbr.rel (%p306) target = $region28
      $region27: #{drnet_node_embeddings.1} parent=11 // pred_region
        _
      $region28: #{drnet_node_embeddings.1} parent=11 // pred_fallthru
        _
      // Predicated region
      $region29: #{drnet_node_embeddings.1} parent=11 // pred_check
        %p309 = pneg %p166
      $region30: #{drnet_node_embeddings.1} parent=11 // pred_check_branch
        %311 = sbr.rel (%p309) target = $region32
      $region31: #{drnet_node_embeddings.1} parent=11 // pred_region
        _
      $region32: #{drnet_node_embeddings.1} parent=11 // pred_fallthru
        _
      // Predicated region
      $region33: #{drnet_node_embeddings.1} parent=11 // pred_check
        %p312 = pneg %p187
      $region34: #{drnet_node_embeddings.1} parent=11 // pred_check_branch
        %314 = sbr.rel (%p312) target = $region36
      $region35: #{drnet_node_embeddings.1} parent=11 // pred_region
        _
      $region36: #{drnet_node_embeddings.1} parent=11 // pred_fallthru
        _
      // Predicated region
      $region37: #{drnet_node_embeddings.1} parent=11 // pred_check
        %p315 = pneg %p208
      $region38: #{drnet_node_embeddings.1} parent=11 // pred_check_branch
        %317 = sbr.rel (%p315) target = $region40
      $region39: #{drnet_node_embeddings.1} parent=11 // pred_region
        _
      $region40: #{drnet_node_embeddings.1} parent=11 // pred_fallthru
        _
      // Predicated region
      $region41: #{drnet_node_embeddings.1} parent=11 // pred_check
        %p318 = pneg %p229
      $region42: #{drnet_node_embeddings.1} parent=11 // pred_check_branch
        %320 = sbr.rel (%p318) target = $region44
      $region43: #{drnet_node_embeddings.1} parent=11 // pred_region
        _
      $region44: #{drnet_node_embeddings.1} parent=11 // pred_fallthru
        _
      // Predicated region
      $region45: #{drnet_node_embeddings.1} parent=11 // pred_check
        %p321 = pneg %p250
      $region46: #{drnet_node_embeddings.1} parent=11 // pred_check_branch
        %323 = sbr.rel (%p321) target = $region48
      $region47: #{drnet_node_embeddings.1} parent=11 // pred_region
        _
      $region48: #{drnet_node_embeddings.1} parent=11 // pred_fallthru
        _
    $region12: #{drnet_node_embeddings.1} parent=5 // pred_fallthru
      _
    %p324 = scmp.lt.s32.totalorder %s16, 2
    // Predicated region
    $region49: #{drnet_node_embeddings.1} parent=5 // pred_check
      %p325 = pneg %p324
    $region50: #{drnet_node_embeddings.1} parent=5 // pred_check_branch
      %327 = sbr.rel (%p325) target = $region52
    $region51: #{drnet_node_embeddings.1} parent=5 // pred_region
      // Predicated region
      $region53: #{drnet_node_embeddings.1} parent=51 // pred_check
        %p328 = pneg %p50
      $region54: #{drnet_node_embeddings.1} parent=51 // pred_check_branch
        %330 = sbr.rel (%p328) target = $region56
      $region55: #{drnet_node_embeddings.1} parent=51 // pred_region
        %s331 = smul.u32 8, %s23
        %p332 = scmp.lt.s32.totalorder %s331, 15
        %s333 = scalar_select %p332, %s331, 15
        %p334 = scmp.lt.s32.totalorder %s24, 0
        %s335 = scalar_select %p334, %s24, 0
        %s336 = sadd.s32 %s335, %s333
        %s337 = smul.addr %s336, 4
        %s338 = scalar_lea.vmem %s0, %s337
        %s339 = smul.u32 8, %s23
      $region56: #{drnet_node_embeddings.1} parent=51 // pred_fallthru
        _
    $region52: #{drnet_node_embeddings.1} parent=5 // pred_fallthru
      _
    %p340 = scmp.le.s32.totalorder 1, %s16
    %p341 = scmp.lt.s32.totalorder %s16, 3
    %p342 = pnand %p340, %p341
    %p343 = pneg %p342
    // Predicated region
    $region57: #{drnet_node_embeddings.1} parent=5 // pred_check
      _
    $region58: #{drnet_node_embeddings.1} parent=5 // pred_check_branch
      %345 = sbr.rel (%p342) target = $region60
    $region59: #{drnet_node_embeddings.1} parent=5 // pred_region
      %s346 = ssub.s32 %s16, 1
      %s347 = smul.u32 8, %s25
      %p348 = scmp.lt.s32.totalorder %s347, 15
      %s349 = scalar_select %p348, %s347, 15
      %p350 = scmp.lt.s32.totalorder %s26, 0
      %s351 = scalar_select %p350, %s26, 0
      %s352 = sadd.s32 %s351, %s349
      %s353 = smul.addr %s352, 4
      %s354 = scalar_lea.vmem %s0, %s353
      %p355 = pneg %p56
      %p356 = pneg %p53
      %s357 = smul.u32 16, %s26
      %p358 = scmp.lt.s32.totalorder %s357, 15
      %s359 = scalar_select %p358, %s357, 15
      %s360 = smul.addr %s359, 4
      %s361 = scalar_lea.vmem %s1, %s360
      %p362 = pneg %p82
      %p363 = pneg %p79
      %p364 = pneg %p103
      %p365 = pneg %p100
      %p366 = pneg %p124
      %p367 = pneg %p121
      %p368 = pneg %p145
      %p369 = pneg %p142
      %p370 = pneg %p166
      %p371 = pneg %p163
      %p372 = pneg %p187
      %p373 = pneg %p184
      %p374 = pneg %p208
      %p375 = pneg %p205
      %p376 = pneg %p229
      %p377 = pneg %p226
      %p378 = pneg %p250
      %p379 = pneg %p247
      %p380 = pneg %p276
      %p381 = pneg %p273
      %s382 = smul.u32 8, %s25
      %p383 = scmp.lt.s32.totalorder %s382, 15
      %s384 = scalar_select %p383, %s382, 15
      %s385 = smul.addr %s384, 8
      %s386 = scalar_lea.vmem %s10, %s385
      %s387 = smul.u32 8, %s25
      %p388 = scmp.lt.s32.totalorder %s387, 15
      %s389 = scalar_select %p388, %s387, 15
      %p390 = scmp.lt.s32.totalorder %s26, 0
      %s391 = scalar_select %p390, %s26, 0
      %s392 = sadd.s32 %s391, %s389
      %s393 = smul.addr %s392, 4
      %s394 = scalar_lea.vmem %s0, %s393
      %s395 = smul.u32 8, %s25
      %s396 = smul.u32 16, %s26
      %p397 = scmp.lt.s32.totalorder %s396, 15
      %s398 = scalar_select %p397, %s396, 15
      %s399 = smul.addr %s398, 4
      %s400 = scalar_lea.vmem %s1, %s399
      %s401 = smul.u32 16, %s26
      %s402 = smul.u32 8, %s25
      %p403 = scmp.lt.s32.totalorder %s402, 15
      %s404 = scalar_select %p403, %s402, 15
      %s405 = smul.addr %s404, 8
      %s406 = scalar_lea.vmem %s10, %s405
      %s407 = smul.u32 8, %s25
      %p409 = scmp.eq.s32.totalorder %s26, 0
      // Predicated region
      $region61: #{drnet_node_embeddings.1} parent=59 // pred_check
        %p410 = pneg %p409
      $region62: #{drnet_node_embeddings.1} parent=59 // pred_check_branch
        %412 = sbr.rel (%p410) target = $region64
      $region63: #{drnet_node_embeddings.1} parent=59 // pred_region
        %413 = vst [vmem:[#allocation2] sm:$0xff] 0.0
        %414 = vst [vmem:[#allocation2 + $0x8] sm:$0xff] 0.0
        %415 = vst [vmem:[#allocation2 + $0x10] sm:$0xff] 0.0
        %416 = vst [vmem:[#allocation2 + $0x18] sm:$0xff] 0.0
        %417 = vst [vmem:[#allocation2 + $0x20] sm:$0xff] 0.0
        %418 = vst [vmem:[#allocation2 + $0x28] sm:$0xff] 0.0
        %419 = vst [vmem:[#allocation2 + $0x30] sm:$0xff] 0.0
        %420 = vst [vmem:[#allocation2 + $0x38] sm:$0xff] 0.0
      $region64: #{drnet_node_embeddings.1} parent=59 // pred_fallthru
        _
      %v421 = vld [vmem:[%s400] sm:$0xf]
      %v422 = vld [vmem:[%s400 + $0x4] sm:$0xf]
      %v423 = vld [vmem:[%s400 + $0x8] sm:$0xf]
      %v424 = vld [vmem:[%s400 + $0xc] sm:$0xf]
      %v425 = vld [vmem:[%s400 + $0x10] sm:$0xf]
      %v426 = vld [vmem:[%s400 + $0x14] sm:$0xf]
      %v427 = vld [vmem:[%s400 + $0x18] sm:$0xf]
      %v428 = vld [vmem:[%s400 + $0x1c] sm:$0xf]
      %v429 = vld [vmem:[%s400 + $0x20] sm:$0xf]
      %v430 = vld [vmem:[%s400 + $0x24] sm:$0xf]
      %v431 = vld [vmem:[%s400 + $0x28] sm:$0xf]
      %v432 = vld [vmem:[%s400 + $0x2c] sm:$0xf]
      %v433 = vld [vmem:[%s400 + $0x30] sm:$0xf]
      %v434 = vld [vmem:[%s400 + $0x34] sm:$0xf]
      %v435 = vld [vmem:[%s400 + $0x38] sm:$0xf]
      %v436 = vld [vmem:[%s400 + $0x3c] sm:$0xf]
      %v437 = vld [vmem:[%s2] sm:$0xf]
      %v438 = vld [vmem:[%s2 + $0x4] sm:$0xf]
      %v439 = vld [vmem:[%s2 + $0x8] sm:$0xf]
      %v440 = vld [vmem:[%s2 + $0xc] sm:$0xf]
      %v441 = vld [vmem:[%s2 + $0x10] sm:$0xf]
      %v442 = vld [vmem:[%s2 + $0x14] sm:$0xf]
      %v443 = vld [vmem:[%s2 + $0x18] sm:$0xf]
      %v444 = vld [vmem:[%s2 + $0x1c] sm:$0xf]
      %v445 = vld [vmem:[%s2 + $0x20] sm:$0xf]
      %v446 = vld [vmem:[%s2 + $0x24] sm:$0xf]
      %v447 = vld [vmem:[%s2 + $0x28] sm:$0xf]
      %v448 = vld [vmem:[%s2 + $0x2c] sm:$0xf]
      %v449 = vld [vmem:[%s2 + $0x30] sm:$0xf]
      %v450 = vld [vmem:[%s2 + $0x34] sm:$0xf]
      %v451 = vld [vmem:[%s2 + $0x38] sm:$0xf]
      %v452 = vld [vmem:[%s2 + $0x3c] sm:$0xf]
      %v453 = vld [vmem:[%s3] sm:$0x1]
      %v455 = vlaneseq
      %v456 = vshrl.u32 %v455, 7
      %v457 = vsub.s32 0, %v456
      %v458 = vrot.slane %v453, %v457
      %v476 = vunpack.c.l.b16 %v421
      %v477 = vunpack.c.l.b16 %v422
      %v478 = vunpack.c.l.b16 %v423
      %v479 = vunpack.c.l.b16 %v424
      %v480 = vunpack.c.l.b16 %v425
      %v481 = vunpack.c.l.b16 %v426
      %v482 = vunpack.c.l.b16 %v427
      %v483 = vunpack.c.l.b16 %v428
      %v484 = vunpack.c.l.b16 %v429
      %v485 = vunpack.c.l.b16 %v430
      %v486 = vunpack.c.l.b16 %v431
      %v487 = vunpack.c.l.b16 %v432
      %v488 = vunpack.c.l.b16 %v433
      %v489 = vunpack.c.l.b16 %v434
      %v490 = vunpack.c.l.b16 %v435
      %v491 = vunpack.c.l.b16 %v436
      %v492 = vpack.c.b16 %v477, %v476
      %v493 = vpack.c.b16 %v479, %v478
      %v494 = vpack.c.b16 %v481, %v480
      %v495 = vpack.c.b16 %v483, %v482
      %v496 = vpack.c.b16 %v485, %v484
      %v497 = vpack.c.b16 %v487, %v486
      %v498 = vpack.c.b16 %v489, %v488
      %v499 = vpack.c.b16 %v491, %v490
      %v524 = vunpack.c.l.b16 %v437
      %v525 = vunpack.c.l.b16 %v438
      %v526 = vunpack.c.l.b16 %v439
      %v527 = vunpack.c.l.b16 %v440
      %v528 = vunpack.c.l.b16 %v441
      %v529 = vunpack.c.l.b16 %v442
      %v530 = vunpack.c.l.b16 %v443
      %v531 = vunpack.c.l.b16 %v444
      %v532 = vunpack.c.l.b16 %v445
      %v533 = vunpack.c.l.b16 %v446
      %v534 = vunpack.c.l.b16 %v447
      %v535 = vunpack.c.l.b16 %v448
      %v536 = vunpack.c.l.b16 %v449
      %v537 = vunpack.c.l.b16 %v450
      %v538 = vunpack.c.l.b16 %v451
      %v539 = vunpack.c.l.b16 %v452
      %v540 = vpack.c.b16 %v525, %v524
      %v541 = vpack.c.b16 %v527, %v526
      %v542 = vpack.c.b16 %v529, %v528
      %v543 = vpack.c.b16 %v531, %v530
      %v544 = vpack.c.b16 %v533, %v532
      %v545 = vpack.c.b16 %v535, %v534
      %v546 = vpack.c.b16 %v537, %v536
      %v547 = vpack.c.b16 %v539, %v538
      %556 = vmatprep.subr.bf16.mxu0 0
      %557 = vmatpush1.bf16.msra.mxu0 %v540
      %558 = vmatprep.subr.bf16.mxu0 0
      %559 = vmatpush1.bf16.msra.mxu0 %v541
      %560 = vmatprep.subr.bf16.mxu0 0
      %561 = vmatpush1.bf16.msra.mxu0 %v542
      %562 = vmatprep.subr.bf16.mxu0 0
      %563 = vmatpush1.bf16.msra.mxu0 %v543
      %564 = vmatprep.subr.bf16.mxu0 0
      %565 = vmatpush1.bf16.msra.mxu0 %v544
      %566 = vmatprep.subr.bf16.mxu0 0
      %567 = vmatpush1.bf16.msra.mxu0 %v545
      %568 = vmatprep.subr.bf16.mxu0 0
      %569 = vmatpush1.bf16.msra.mxu0 %v546
      %570 = vmatprep.subr.bf16.mxu0 0
      %571 = vmatpush1.bf16.msra.mxu0 %v547
      %572 = vmatprep.subr.bf16.mxu0 0
      %573 = vmatpush1.bf16.msra.mxu0 0
      %574 = vmatprep.subr.bf16.mxu0 0
      %575 = vmatpush1.bf16.msra.mxu0 0
      %576 = vmatprep.subr.bf16.mxu0 0
      %577 = vmatpush1.bf16.msra.mxu0 0
      %578 = vmatprep.subr.bf16.mxu0 0
      %579 = vmatpush1.bf16.msra.mxu0 0
      %580 = vmatprep.subr.bf16.mxu0 0
      %581 = vmatpush1.bf16.msra.mxu0 0
      %582 = vmatprep.subr.bf16.mxu0 0
      %583 = vmatpush1.bf16.msra.mxu0 0
      %584 = vmatprep.subr.bf16.mxu0 0
      %585 = vmatpush1.bf16.msra.mxu0 0
      %586 = vmatprep.subr.bf16.mxu0 0
      %587 = vmatpush1.bf16.msra.mxu0 0
      %588 = vmatprep.mubr.bf16.mxu0 0
      %589 = vmatmul.mubr.bf16.gmra.mrb[0].mxu0 %v492
      %v590 = vpop.f32.mrb[0].mxu0
      %v591 = vadd.f32 %v458, %v590
      %v592 = vpop.f32.mrb[0].mxu0
      %v593 = vpop.f32.mrb[0].mxu0
      %v594 = vadd.f32 %v458, %v593
      %v595 = vpop.f32.mrb[0].mxu0
      %596 = vmatprep.mubr.bf16.mxu0 0
      %597 = vmatmul.mubr.bf16.gmra.mrb[0].mxu0 %v493
      %v598 = vpop.f32.mrb[0].mxu0
      %v599 = vadd.f32 %v458, %v598
      %v600 = vpop.f32.mrb[0].mxu0
      %v601 = vpop.f32.mrb[0].mxu0
      %v602 = vadd.f32 %v458, %v601
      %v603 = vpop.f32.mrb[0].mxu0
      %604 = vmatprep.mubr.bf16.mxu0 0
      %605 = vmatmul.mubr.bf16.gmra.mrb[0].mxu0 %v494
      %v606 = vpop.f32.mrb[0].mxu0
      %v607 = vadd.f32 %v458, %v606
      %v608 = vpop.f32.mrb[0].mxu0
      %v609 = vpop.f32.mrb[0].mxu0
      %v610 = vadd.f32 %v458, %v609
      %v611 = vpop.f32.mrb[0].mxu0
      %612 = vmatprep.mubr.bf16.mxu0 0
      %613 = vmatmul.mubr.bf16.gmra.mrb[0].mxu0 %v495
      %v614 = vpop.f32.mrb[0].mxu0
      %v615 = vadd.f32 %v458, %v614
      %v616 = vpop.f32.mrb[0].mxu0
      %v617 = vpop.f32.mrb[0].mxu0
      %v618 = vadd.f32 %v458, %v617
      %v619 = vpop.f32.mrb[0].mxu0
      %620 = vmatprep.mubr.bf16.mxu0 0
      %621 = vmatmul.mubr.bf16.gmra.mrb[0].mxu0 %v496
      %v622 = vpop.f32.mrb[0].mxu0
      %v623 = vadd.f32 %v458, %v622
      %v624 = vpop.f32.mrb[0].mxu0
      %v625 = vpop.f32.mrb[0].mxu0
      %v626 = vadd.f32 %v458, %v625
      %v627 = vpop.f32.mrb[0].mxu0
      %628 = vmatprep.mubr.bf16.mxu0 0
      %629 = vmatmul.mubr.bf16.gmra.mrb[0].mxu0 %v497
      %v630 = vpop.f32.mrb[0].mxu0
      %v631 = vadd.f32 %v458, %v630
      %v632 = vpop.f32.mrb[0].mxu0
      %v633 = vpop.f32.mrb[0].mxu0
      %v634 = vadd.f32 %v458, %v633
      %v635 = vpop.f32.mrb[0].mxu0
      %636 = vmatprep.mubr.bf16.mxu0 0
      %637 = vmatmul.mubr.bf16.gmra.mrb[0].mxu0 %v498
      %v638 = vpop.f32.mrb[0].mxu0
      %v639 = vadd.f32 %v458, %v638
      %v640 = vpop.f32.mrb[0].mxu0
      %v641 = vpop.f32.mrb[0].mxu0
      %v642 = vadd.f32 %v458, %v641
      %v643 = vpop.f32.mrb[0].mxu0
      %644 = vmatprep.mubr.bf16.mxu0 0
      %645 = vmatmul.mubr.bf16.gmra.mrb[0].mxu0 %v499
      %v646 = vpop.f32.mrb[0].mxu0
      %v647 = vadd.f32 %v458, %v646
      %v648 = vpop.f32.mrb[0].mxu0
      %v649 = vpop.f32.mrb[0].mxu0
      %v650 = vadd.f32 %v458, %v649
      %v651 = vpop.f32.mrb[0].mxu0
      %652 = vdwg.mxu0
      %v653 = vmax.f32 %v591, 0.0
      %v654 = vmax.f32 %v594, 0.0
      %v655 = vmax.f32 %v599, 0.0
      %v656 = vmax.f32 %v602, 0.0
      %v657 = vmax.f32 %v607, 0.0
      %v658 = vmax.f32 %v610, 0.0
      %v659 = vmax.f32 %v615, 0.0
      %v660 = vmax.f32 %v618, 0.0
      %v661 = vmax.f32 %v623, 0.0
      %v662 = vmax.f32 %v626, 0.0
      %v663 = vmax.f32 %v631, 0.0
      %v664 = vmax.f32 %v634, 0.0
      %v665 = vmax.f32 %v639, 0.0
      %v666 = vmax.f32 %v642, 0.0
      %v667 = vmax.f32 %v647, 0.0
      %v668 = vmax.f32 %v650, 0.0
      %v669 = vpack.c.bf16 %v654, %v653
      %v670 = vpack.c.bf16 %v656, %v655
      %v671 = vpack.c.bf16 %v658, %v657
      %v672 = vpack.c.bf16 %v660, %v659
      %v673 = vpack.c.bf16 %v662, %v661
      %v674 = vpack.c.bf16 %v664, %v663
      %v675 = vpack.c.bf16 %v666, %v665
      %v676 = vpack.c.bf16 %v668, %v667
      %v677 = vld [vmem:[%s4] sm:$0xf]
      %v678 = vld [vmem:[%s4 + $0x4] sm:$0xf]
      %v679 = vld [vmem:[%s4 + $0x8] sm:$0xf]
      %v680 = vld [vmem:[%s4 + $0xc] sm:$0xf]
      %v681 = vld [vmem:[%s4 + $0x10] sm:$0xf]
      %v682 = vld [vmem:[%s4 + $0x14] sm:$0xf]
      %v683 = vld [vmem:[%s4 + $0x18] sm:$0xf]
      %v684 = vld [vmem:[%s4 + $0x1c] sm:$0xf]
      %v685 = vld [vmem:[%s4 + $0x20] sm:$0xf]
      %v686 = vld [vmem:[%s4 + $0x24] sm:$0xf]
      %v687 = vld [vmem:[%s4 + $0x28] sm:$0xf]
      %v688 = vld [vmem:[%s4 + $0x2c] sm:$0xf]
      %v689 = vld [vmem:[%s4 + $0x30] sm:$0xf]
      %v690 = vld [vmem:[%s4 + $0x34] sm:$0xf]
      %v691 = vld [vmem:[%s4 + $0x38] sm:$0xf]
      %v692 = vld [vmem:[%s4 + $0x3c] sm:$0xf]
      %v709 = vunpack.c.l.b16 %v677
      %v710 = vunpack.c.l.b16 %v678
      %v711 = vunpack.c.l.b16 %v679
      %v712 = vunpack.c.l.b16 %v680
      %v713 = vunpack.c.l.b16 %v681
      %v714 = vunpack.c.l.b16 %v682
      %v715 = vunpack.c.l.b16 %v683
      %v716 = vunpack.c.l.b16 %v684
      %v717 = vunpack.c.l.b16 %v685
      %v718 = vunpack.c.l.b16 %v686
      %v719 = vunpack.c.l.b16 %v687
      %v720 = vunpack.c.l.b16 %v688
      %v721 = vunpack.c.l.b16 %v689
      %v722 = vunpack.c.l.b16 %v690
      %v723 = vunpack.c.l.b16 %v691
      %v724 = vunpack.c.l.b16 %v692
      %v725 = vpack.c.b16 %v710, %v709
      %v726 = vpack.c.b16 %v712, %v711
      %v727 = vpack.c.b16 %v714, %v713
      %v728 = vpack.c.b16 %v716, %v715
      %v729 = vpack.c.b16 %v718, %v717
      %v730 = vpack.c.b16 %v720, %v719
      %v731 = vpack.c.b16 %v722, %v721
      %v732 = vpack.c.b16 %v724, %v723
      %741 = vmatprep.subr.bf16.mxu0 0
      %742 = vmatpush1.bf16.msra.mxu0 %v725
      %743 = vmatprep.subr.bf16.mxu0 0
      %744 = vmatpush1.bf16.msra.mxu0 %v726
      %745 = vmatprep.subr.bf16.mxu0 0
      %746 = vmatpush1.bf16.msra.mxu0 %v727
      %747 = vmatprep.subr.bf16.mxu0 0
      %748 = vmatpush1.bf16.msra.mxu0 %v728
      %749 = vmatprep.subr.bf16.mxu0 0
      %750 = vmatpush1.bf16.msra.mxu0 %v729
      %751 = vmatprep.subr.bf16.mxu0 0
      %752 = vmatpush1.bf16.msra.mxu0 %v730
      %753 = vmatprep.subr.bf16.mxu0 0
      %754 = vmatpush1.bf16.msra.mxu0 %v731
      %755 = vmatprep.subr.bf16.mxu0 0
      %756 = vmatpush1.bf16.msra.mxu0 %v732
      %757 = vmatprep.subr.bf16.mxu0 0
      %758 = vmatpush1.bf16.msra.mxu0 0
      %759 = vmatprep.subr.bf16.mxu0 0
      %760 = vmatpush1.bf16.msra.mxu0 0
      %761 = vmatprep.subr.bf16.mxu0 0
      %762 = vmatpush1.bf16.msra.mxu0 0
      %763 = vmatprep.subr.bf16.mxu0 0
      %764 = vmatpush1.bf16.msra.mxu0 0
      %765 = vmatprep.subr.bf16.mxu0 0
      %766 = vmatpush1.bf16.msra.mxu0 0
      %767 = vmatprep.subr.bf16.mxu0 0
      %768 = vmatpush1.bf16.msra.mxu0 0
      %769 = vmatprep.subr.bf16.mxu0 0
      %770 = vmatpush1.bf16.msra.mxu0 0
      %771 = vmatprep.subr.bf16.mxu0 0
      %772 = vmatpush1.bf16.msra.mxu0 0
      %773 = vmatprep.mubr.bf16.mxu0 0
      %774 = vmatmul.mubr.bf16.gmra.mrb[0].mxu0 %v669
      %v775 = vpop.f32.mrb[0].mxu0
      %v776 = vadd.f32 0.0, %v775
      %v777 = vpop.f32.mrb[0].mxu0
      %v778 = vpop.f32.mrb[0].mxu0
      %v779 = vadd.f32 0.0, %v778
      %v780 = vpop.f32.mrb[0].mxu0
      %781 = vmatprep.mubr.bf16.mxu0 0
      %782 = vmatmul.mubr.bf16.gmra.mrb[0].mxu0 %v670
      %v783 = vpop.f32.mrb[0].mxu0
      %v784 = vadd.f32 0.0, %v783
      %v785 = vpop.f32.mrb[0].mxu0
      %v786 = vpop.f32.mrb[0].mxu0
      %v787 = vadd.f32 0.0, %v786
      %v788 = vpop.f32.mrb[0].mxu0
      %789 = vmatprep.mubr.bf16.mxu0 0
      %790 = vmatmul.mubr.bf16.gmra.mrb[0].mxu0 %v671
      %v791 = vpop.f32.mrb[0].mxu0
      %v792 = vadd.f32 0.0, %v791
      %v793 = vpop.f32.mrb[0].mxu0
      %v794 = vpop.f32.mrb[0].mxu0
      %v795 = vadd.f32 0.0, %v794
      %v796 = vpop.f32.mrb[0].mxu0
      %797 = vmatprep.mubr.bf16.mxu0 0
      %798 = vmatmul.mubr.bf16.gmra.mrb[0].mxu0 %v672
      %v799 = vpop.f32.mrb[0].mxu0
      %v800 = vadd.f32 0.0, %v799
      %v801 = vpop.f32.mrb[0].mxu0
      %v802 = vpop.f32.mrb[0].mxu0
      %v803 = vadd.f32 0.0, %v802
      %v804 = vpop.f32.mrb[0].mxu0
      %805 = vmatprep.mubr.bf16.mxu0 0
      %806 = vmatmul.mubr.bf16.gmra.mrb[0].mxu0 %v673
      %v807 = vpop.f32.mrb[0].mxu0
      %v808 = vadd.f32 0.0, %v807
      %v809 = vpop.f32.mrb[0].mxu0
      %v810 = vpop.f32.mrb[0].mxu0
      %v811 = vadd.f32 0.0, %v810
      %v812 = vpop.f32.mrb[0].mxu0
      %813 = vmatprep.mubr.bf16.mxu0 0
      %814 = vmatmul.mubr.bf16.gmra.mrb[0].mxu0 %v674
      %v815 = vpop.f32.mrb[0].mxu0
      %v816 = vadd.f32 0.0, %v815
      %v817 = vpop.f32.mrb[0].mxu0
      %v818 = vpop.f32.mrb[0].mxu0
      %v819 = vadd.f32 0.0, %v818
      %v820 = vpop.f32.mrb[0].mxu0
      %821 = vmatprep.mubr.bf16.mxu0 0
      %822 = vmatmul.mubr.bf16.gmra.mrb[0].mxu0 %v675
      %v823 = vpop.f32.mrb[0].mxu0
      %v824 = vadd.f32 0.0, %v823
      %v825 = vpop.f32.mrb[0].mxu0
      %v826 = vpop.f32.mrb[0].mxu0
      %v827 = vadd.f32 0.0, %v826
      %v828 = vpop.f32.mrb[0].mxu0
      %829 = vmatprep.mubr.bf16.mxu0 0
      %830 = vmatmul.mubr.bf16.gmra.mrb[0].mxu0 %v676
      %v831 = vpop.f32.mrb[0].mxu0
      %v832 = vadd.f32 0.0, %v831
      %v833 = vpop.f32.mrb[0].mxu0
      %v834 = vpop.f32.mrb[0].mxu0
      %v835 = vadd.f32 0.0, %v834
      %v836 = vpop.f32.mrb[0].mxu0
      %837 = vdwg.mxu0
      %v838 = vld [vmem:[#allocation2] sm:$0xff]
      %v839 = vld [vmem:[#allocation2 + $0x8] sm:$0xff]
      %v840 = vld [vmem:[#allocation2 + $0x10] sm:$0xff]
      %v841 = vld [vmem:[#allocation2 + $0x18] sm:$0xff]
      %v842 = vld [vmem:[#allocation2 + $0x20] sm:$0xff]
      %v843 = vld [vmem:[#allocation2 + $0x28] sm:$0xff]
      %v844 = vld [vmem:[#allocation2 + $0x30] sm:$0xff]
      %v845 = vld [vmem:[#allocation2 + $0x38] sm:$0xff]
      %v846 = vld [vmem:[%s394] sm:$0xf]
      %v847 = vld [vmem:[%s394 + $0x4] sm:$0xf]
      %v848 = vld [vmem:[%s394 + $0x8] sm:$0xf]
      %v849 = vld [vmem:[%s394 + $0xc] sm:$0xf]
      %v850 = vld [vmem:[%s394 + $0x10] sm:$0xf]
      %v851 = vld [vmem:[%s394 + $0x14] sm:$0xf]
      %v852 = vld [vmem:[%s394 + $0x18] sm:$0xf]
      %v853 = vld [vmem:[%s394 + $0x1c] sm:$0xf]
      %v854 = vpack.c.bf16 %v779, %v776
      %v855 = vpack.c.bf16 %v787, %v784
      %v856 = vpack.c.bf16 %v795, %v792
      %v857 = vpack.c.bf16 %v803, %v800
      %v858 = vpack.c.bf16 %v811, %v808
      %v859 = vpack.c.bf16 %v819, %v816
      %v860 = vpack.c.bf16 %v827, %v824
      %v861 = vpack.c.bf16 %v835, %v832
      %v870 = vunpack.c.l.b16 %v846
      %v871 = vunpack.c.l.b16 %v847
      %v872 = vunpack.c.l.b16 %v848
      %v873 = vunpack.c.l.b16 %v849
      %v874 = vunpack.c.l.b16 %v850
      %v875 = vunpack.c.l.b16 %v851
      %v876 = vunpack.c.l.b16 %v852
      %v877 = vunpack.c.l.b16 %v853
      %v878 = vpack.c.b16 %v871, %v870
      %v879 = vpack.c.b16 %v873, %v872
      %v880 = vpack.c.b16 %v875, %v874
      %v881 = vpack.c.b16 %v877, %v876
      %886 = vmatprep.subr.bf16.mxu0 0
      %887 = vmatpush1.bf16.msra.mxu0 %v854
      %888 = vmatprep.subr.bf16.mxu0 0
      %889 = vmatpush1.bf16.msra.mxu0 %v855
      %890 = vmatprep.subr.bf16.mxu0 0
      %891 = vmatpush1.bf16.msra.mxu0 %v856
      %892 = vmatprep.subr.bf16.mxu0 0
      %893 = vmatpush1.bf16.msra.mxu0 %v857
      %894 = vmatprep.subr.bf16.mxu0 0
      %895 = vmatpush1.bf16.msra.mxu0 %v858
      %896 = vmatprep.subr.bf16.mxu0 0
      %897 = vmatpush1.bf16.msra.mxu0 %v859
      %898 = vmatprep.subr.bf16.mxu0 0
      %899 = vmatpush1.bf16.msra.mxu0 %v860
      %900 = vmatprep.subr.bf16.mxu0 0
      %901 = vmatpush1.bf16.msra.mxu0 %v861
      %902 = vmatprep.subr.bf16.mxu0 0
      %903 = vmatpush1.bf16.msra.mxu0 0
      %904 = vmatprep.subr.bf16.mxu0 0
      %905 = vmatpush1.bf16.msra.mxu0 0
      %906 = vmatprep.subr.bf16.mxu0 0
      %907 = vmatpush1.bf16.msra.mxu0 0
      %908 = vmatprep.subr.bf16.mxu0 0
      %909 = vmatpush1.bf16.msra.mxu0 0
      %910 = vmatprep.subr.bf16.mxu0 0
      %911 = vmatpush1.bf16.msra.mxu0 0
      %912 = vmatprep.subr.bf16.mxu0 0
      %913 = vmatpush1.bf16.msra.mxu0 0
      %914 = vmatprep.subr.bf16.mxu0 0
      %915 = vmatpush1.bf16.msra.mxu0 0
      %916 = vmatprep.subr.bf16.mxu0 0
      %917 = vmatpush1.bf16.msra.mxu0 0
      %918 = vmatprep.mubr.bf16.mxu0 0
      %919 = vmatmul.mubr.bf16.gmra.mrb[0].mxu0 %v878
      %v920 = vpop.f32.mrb[0].mxu0
      %v921 = vadd.f32 0.0, %v920
      %v922 = vpop.f32.mrb[0].mxu0
      %v923 = vpop.f32.mrb[0].mxu0
      %v924 = vadd.f32 0.0, %v923
      %v925 = vpop.f32.mrb[0].mxu0
      %926 = vmatprep.mubr.bf16.mxu0 0
      %927 = vmatmul.mubr.bf16.gmra.mrb[0].mxu0 %v879
      %v928 = vpop.f32.mrb[0].mxu0
      %v929 = vadd.f32 0.0, %v928
      %v930 = vpop.f32.mrb[0].mxu0
      %v931 = vpop.f32.mrb[0].mxu0
      %v932 = vadd.f32 0.0, %v931
      %v933 = vpop.f32.mrb[0].mxu0
      %934 = vmatprep.mubr.bf16.mxu0 0
      %935 = vmatmul.mubr.bf16.gmra.mrb[0].mxu0 %v880
      %v936 = vpop.f32.mrb[0].mxu0
      %v937 = vadd.f32 0.0, %v936
      %v938 = vpop.f32.mrb[0].mxu0
      %v939 = vpop.f32.mrb[0].mxu0
      %v940 = vadd.f32 0.0, %v939
      %v941 = vpop.f32.mrb[0].mxu0
      %942 = vmatprep.mubr.bf16.mxu0 0
      %943 = vmatmul.mubr.bf16.gmra.mrb[0].mxu0 %v881
      %v944 = vpop.f32.mrb[0].mxu0
      %v945 = vadd.f32 0.0, %v944
      %v946 = vpop.f32.mrb[0].mxu0
      %v947 = vpop.f32.mrb[0].mxu0
      %v948 = vadd.f32 0.0, %v947
      %v949 = vpop.f32.mrb[0].mxu0
      %950 = vdwg.mxu0
      %v951 = vadd.f32 %v838, %v921
      %v952 = vadd.f32 %v839, %v924
      %v953 = vadd.f32 %v840, %v929
      %v954 = vadd.f32 %v841, %v932
      %v955 = vadd.f32 %v842, %v937
      %v956 = vadd.f32 %v843, %v940
      %v957 = vadd.f32 %v844, %v945
      %v958 = vadd.f32 %v845, %v948
      %959 = vst [vmem:[#allocation2] sm:$0xff] %v951
      %960 = vst [vmem:[#allocation2 + $0x8] sm:$0xff] %v952
      %961 = vst [vmem:[#allocation2 + $0x10] sm:$0xff] %v953
      %962 = vst [vmem:[#allocation2 + $0x18] sm:$0xff] %v954
      %963 = vst [vmem:[#allocation2 + $0x20] sm:$0xff] %v955
      %964 = vst [vmem:[#allocation2 + $0x28] sm:$0xff] %v956
      %965 = vst [vmem:[#allocation2 + $0x30] sm:$0xff] %v957
      %966 = vst [vmem:[#allocation2 + $0x38] sm:$0xff] %v958
      // Predicated region
      $region65: #{drnet_node_embeddings.1} parent=59 // pred_check
        %p967 = pneg %p409
      $region66: #{drnet_node_embeddings.1} parent=59 // pred_check_branch
        %969 = sbr.rel (%p967) target = $region68
      $region67: #{drnet_node_embeddings.1} parent=59 // pred_region
        %v970 = vld [vmem:[#allocation2] sm:$0xff]
        %v971 = vld [vmem:[#allocation2 + $0x8] sm:$0xff]
        %v972 = vld [vmem:[#allocation2 + $0x10] sm:$0xff]
        %v973 = vld [vmem:[#allocation2 + $0x18] sm:$0xff]
        %v974 = vld [vmem:[#allocation2 + $0x20] sm:$0xff]
        %v975 = vld [vmem:[#allocation2 + $0x28] sm:$0xff]
        %v976 = vld [vmem:[#allocation2 + $0x30] sm:$0xff]
        %v977 = vld [vmem:[#allocation2 + $0x38] sm:$0xff]
        %v978 = vld [vmem:[%s5] sm:$0x1]
        %v980 = vlaneseq
        %v981 = vshrl.u32 %v980, 7
        %v982 = vsub.s32 0, %v981
        %v983 = vrot.slane %v978, %v982
        %v985 = vadd.f32 %v970, %v983
        %v986 = vadd.f32 %v971, %v983
        %v987 = vadd.f32 %v972, %v983
        %v988 = vadd.f32 %v973, %v983
        %v989 = vadd.f32 %v974, %v983
        %v990 = vadd.f32 %v975, %v983
        %v991 = vadd.f32 %v976, %v983
        %v992 = vadd.f32 %v977, %v983
        %v993 = vmax.f32 %v985, 0.0
        %v994 = vmax.f32 %v986, 0.0
        %v995 = vmax.f32 %v987, 0.0
        %v996 = vmax.f32 %v988, 0.0
        %v997 = vmax.f32 %v989, 0.0
        %v998 = vmax.f32 %v990, 0.0
        %v999 = vmax.f32 %v991, 0.0
        %v1000 = vmax.f32 %v992, 0.0
        %v1001 = vpack.c.bf16 %v994, %v993
        %v1002 = vpack.c.bf16 %v996, %v995
        %v1003 = vpack.c.bf16 %v998, %v997
        %v1004 = vpack.c.bf16 %v1000, %v999
        %v1005 = vld [vmem:[%s6] sm:$0xf]
        %v1006 = vld [vmem:[%s6 + $0x4] sm:$0xf]
        %v1007 = vld [vmem:[%s6 + $0x8] sm:$0xf]
        %v1008 = vld [vmem:[%s6 + $0xc] sm:$0xf]
        %v1009 = vld [vmem:[%s6 + $0x10] sm:$0xf]
        %v1010 = vld [vmem:[%s6 + $0x14] sm:$0xf]
        %v1011 = vld [vmem:[%s6 + $0x18] sm:$0xf]
        %v1012 = vld [vmem:[%s6 + $0x1c] sm:$0xf]
        %v1013 = vld [vmem:[%s6 + $0x20] sm:$0xf]
        %v1014 = vld [vmem:[%s6 + $0x24] sm:$0xf]
        %v1015 = vld [vmem:[%s6 + $0x28] sm:$0xf]
        %v1016 = vld [vmem:[%s6 + $0x2c] sm:$0xf]
        %v1017 = vld [vmem:[%s6 + $0x30] sm:$0xf]
        %v1018 = vld [vmem:[%s6 + $0x34] sm:$0xf]
        %v1019 = vld [vmem:[%s6 + $0x38] sm:$0xf]
        %v1020 = vld [vmem:[%s6 + $0x3c] sm:$0xf]
        %v1021 = vld [vmem:[%s7] sm:$0x1]
        %v1023 = vlaneseq
        %v1024 = vshrl.u32 %v1023, 7
        %v1025 = vsub.s32 0, %v1024
        %v1026 = vrot.slane %v1021, %v1025
        %v1044 = vunpack.c.l.b16 %v1005
        %v1045 = vunpack.c.l.b16 %v1006
        %v1046 = vunpack.c.l.b16 %v1007
        %v1047 = vunpack.c.l.b16 %v1008
        %v1048 = vunpack.c.l.b16 %v1009
        %v1049 = vunpack.c.l.b16 %v1010
        %v1050 = vunpack.c.l.b16 %v1011
        %v1051 = vunpack.c.l.b16 %v1012
        %v1052 = vunpack.c.l.b16 %v1013
        %v1053 = vunpack.c.l.b16 %v1014
        %v1054 = vunpack.c.l.b16 %v1015
        %v1055 = vunpack.c.l.b16 %v1016
        %v1056 = vunpack.c.l.b16 %v1017
        %v1057 = vunpack.c.l.b16 %v1018
        %v1058 = vunpack.c.l.b16 %v1019
        %v1059 = vunpack.c.l.b16 %v1020
        %v1060 = vpack.c.b16 %v1045, %v1044
        %v1061 = vpack.c.b16 %v1047, %v1046
        %v1062 = vpack.c.b16 %v1049, %v1048
        %v1063 = vpack.c.b16 %v1051, %v1050
        %v1064 = vpack.c.b16 %v1053, %v1052
        %v1065 = vpack.c.b16 %v1055, %v1054
        %v1066 = vpack.c.b16 %v1057, %v1056
        %v1067 = vpack.c.b16 %v1059, %v1058
        %1076 = vmatprep.subr.bf16.mxu0 0
        %1077 = vmatpush1.bf16.msra.mxu0 %v1060
        %1078 = vmatprep.subr.bf16.mxu0 0
        %1079 = vmatpush1.bf16.msra.mxu0 %v1061
        %1080 = vmatprep.subr.bf16.mxu0 0
        %1081 = vmatpush1.bf16.msra.mxu0 %v1062
        %1082 = vmatprep.subr.bf16.mxu0 0
        %1083 = vmatpush1.bf16.msra.mxu0 %v1063
        %1084 = vmatprep.subr.bf16.mxu0 0
        %1085 = vmatpush1.bf16.msra.mxu0 %v1064
        %1086 = vmatprep.subr.bf16.mxu0 0
        %1087 = vmatpush1.bf16.msra.mxu0 %v1065
        %1088 = vmatprep.subr.bf16.mxu0 0
        %1089 = vmatpush1.bf16.msra.mxu0 %v1066
        %1090 = vmatprep.subr.bf16.mxu0 0
        %1091 = vmatpush1.bf16.msra.mxu0 %v1067
        %1092 = vmatprep.subr.bf16.mxu0 0
        %1093 = vmatpush1.bf16.msra.mxu0 0
        %1094 = vmatprep.subr.bf16.mxu0 0
        %1095 = vmatpush1.bf16.msra.mxu0 0
        %1096 = vmatprep.subr.bf16.mxu0 0
        %1097 = vmatpush1.bf16.msra.mxu0 0
        %1098 = vmatprep.subr.bf16.mxu0 0
        %1099 = vmatpush1.bf16.msra.mxu0 0
        %1100 = vmatprep.subr.bf16.mxu0 0
        %1101 = vmatpush1.bf16.msra.mxu0 0
        %1102 = vmatprep.subr.bf16.mxu0 0
        %1103 = vmatpush1.bf16.msra.mxu0 0
        %1104 = vmatprep.subr.bf16.mxu0 0
        %1105 = vmatpush1.bf16.msra.mxu0 0
        %1106 = vmatprep.subr.bf16.mxu0 0
        %1107 = vmatpush1.bf16.msra.mxu0 0
        %1108 = vmatprep.mubr.bf16.mxu0 0
        %1109 = vmatmul.mubr.bf16.gmra.mrb[0].mxu0 %v1001
        %v1110 = vpop.f32.mrb[0].mxu0
        %v1111 = vadd.f32 %v1026, %v1110
        %v1112 = vpop.f32.mrb[0].mxu0
        %v1113 = vpop.f32.mrb[0].mxu0
        %v1114 = vadd.f32 %v1026, %v1113
        %v1115 = vpop.f32.mrb[0].mxu0
        %1116 = vmatprep.mubr.bf16.mxu0 0
        %1117 = vmatmul.mubr.bf16.gmra.mrb[0].mxu0 %v1002
        %v1118 = vpop.f32.mrb[0].mxu0
        %v1119 = vadd.f32 %v1026, %v1118
        %v1120 = vpop.f32.mrb[0].mxu0
        %v1121 = vpop.f32.mrb[0].mxu0
        %v1122 = vadd.f32 %v1026, %v1121
        %v1123 = vpop.f32.mrb[0].mxu0
        %1124 = vmatprep.mubr.bf16.mxu0 0
        %1125 = vmatmul.mubr.bf16.gmra.mrb[0].mxu0 %v1003
        %v1126 = vpop.f32.mrb[0].mxu0
        %v1127 = vadd.f32 %v1026, %v1126
        %v1128 = vpop.f32.mrb[0].mxu0
        %v1129 = vpop.f32.mrb[0].mxu0
        %v1130 = vadd.f32 %v1026, %v1129
        %v1131 = vpop.f32.mrb[0].mxu0
        %1132 = vmatprep.mubr.bf16.mxu0 0
        %1133 = vmatmul.mubr.bf16.gmra.mrb[0].mxu0 %v1004
        %v1134 = vpop.f32.mrb[0].mxu0
        %v1135 = vadd.f32 %v1026, %v1134
        %v1136 = vpop.f32.mrb[0].mxu0
        %v1137 = vpop.f32.mrb[0].mxu0
        %v1138 = vadd.f32 %v1026, %v1137
        %v1139 = vpop.f32.mrb[0].mxu0
        %1140 = vdwg.mxu0
        %v1141 = vmax.f32 %v1111, 0.0
        %v1142 = vmax.f32 %v1114, 0.0
        %v1143 = vmax.f32 %v1119, 0.0
        %v1144 = vmax.f32 %v1122, 0.0
        %v1145 = vmax.f32 %v1127, 0.0
        %v1146 = vmax.f32 %v1130, 0.0
        %v1147 = vmax.f32 %v1135, 0.0
        %v1148 = vmax.f32 %v1138, 0.0
        %v1149 = vpack.c.bf16 %v1142, %v1141
        %v1150 = vpack.c.bf16 %v1144, %v1143
        %v1151 = vpack.c.bf16 %v1146, %v1145
        %v1152 = vpack.c.bf16 %v1148, %v1147
        %v1153 = vld [vmem:[%s8] sm:$0xf]
        %v1154 = vld [vmem:[%s8 + $0x4] sm:$0xf]
        %v1155 = vld [vmem:[%s8 + $0x8] sm:$0xf]
        %v1156 = vld [vmem:[%s8 + $0xc] sm:$0xf]
        %v1157 = vld [vmem:[%s8 + $0x10] sm:$0xf]
        %v1158 = vld [vmem:[%s8 + $0x14] sm:$0xf]
        %v1159 = vld [vmem:[%s8 + $0x18] sm:$0xf]
        %v1160 = vld [vmem:[%s8 + $0x1c] sm:$0xf]
        %v1161 = vld [vmem:[%s8 + $0x20] sm:$0xf]
        %v1162 = vld [vmem:[%s8 + $0x24] sm:$0xf]
        %v1163 = vld [vmem:[%s8 + $0x28] sm:$0xf]
        %v1164 = vld [vmem:[%s8 + $0x2c] sm:$0xf]
        %v1165 = vld [vmem:[%s8 + $0x30] sm:$0xf]
        %v1166 = vld [vmem:[%s8 + $0x34] sm:$0xf]
        %v1167 = vld [vmem:[%s8 + $0x38] sm:$0xf]
        %v1168 = vld [vmem:[%s8 + $0x3c] sm:$0xf]
        %v1169 = vld [vmem:[%s9] sm:$0x1]
        %v1171 = vlaneseq
        %v1172 = vshrl.u32 %v1171, 7
        %v1173 = vsub.s32 0, %v1172
        %v1174 = vrot.slane %v1169, %v1173
        %v1192 = vunpack.c.l.b16 %v1153
        %v1193 = vunpack.c.l.b16 %v1154
        %v1194 = vunpack.c.l.b16 %v1155
        %v1195 = vunpack.c.l.b16 %v1156
        %v1196 = vunpack.c.l.b16 %v1157
        %v1197 = vunpack.c.l.b16 %v1158
        %v1198 = vunpack.c.l.b16 %v1159
        %v1199 = vunpack.c.l.b16 %v1160
        %v1200 = vunpack.c.l.b16 %v1161
        %v1201 = vunpack.c.l.b16 %v1162
        %v1202 = vunpack.c.l.b16 %v1163
        %v1203 = vunpack.c.l.b16 %v1164
        %v1204 = vunpack.c.l.b16 %v1165
        %v1205 = vunpack.c.l.b16 %v1166
        %v1206 = vunpack.c.l.b16 %v1167
        %v1207 = vunpack.c.l.b16 %v1168
        %v1208 = vpack.c.b16 %v1193, %v1192
        %v1209 = vpack.c.b16 %v1195, %v1194
        %v1210 = vpack.c.b16 %v1197, %v1196
        %v1211 = vpack.c.b16 %v1199, %v1198
        %v1212 = vpack.c.b16 %v1201, %v1200
        %v1213 = vpack.c.b16 %v1203, %v1202
        %v1214 = vpack.c.b16 %v1205, %v1204
        %v1215 = vpack.c.b16 %v1207, %v1206
        %1224 = vmatprep.subr.bf16.mxu0 0
        %1225 = vmatpush1.bf16.msra.mxu0 %v1208
        %1226 = vmatprep.subr.bf16.mxu0 0
        %1227 = vmatpush1.bf16.msra.mxu0 %v1209
        %1228 = vmatprep.subr.bf16.mxu0 0
        %1229 = vmatpush1.bf16.msra.mxu0 %v1210
        %1230 = vmatprep.subr.bf16.mxu0 0
        %1231 = vmatpush1.bf16.msra.mxu0 %v1211
        %1232 = vmatprep.subr.bf16.mxu0 0
        %1233 = vmatpush1.bf16.msra.mxu0 %v1212
        %1234 = vmatprep.subr.bf16.mxu0 0
        %1235 = vmatpush1.bf16.msra.mxu0 %v1213
        %1236 = vmatprep.subr.bf16.mxu0 0
        %1237 = vmatpush1.bf16.msra.mxu0 %v1214
        %1238 = vmatprep.subr.bf16.mxu0 0
        %1239 = vmatpush1.bf16.msra.mxu0 %v1215
        %1240 = vmatprep.subr.bf16.mxu0 0
        %1241 = vmatpush1.bf16.msra.mxu0 0
        %1242 = vmatprep.subr.bf16.mxu0 0
        %1243 = vmatpush1.bf16.msra.mxu0 0
        %1244 = vmatprep.subr.bf16.mxu0 0
        %1245 = vmatpush1.bf16.msra.mxu0 0
        %1246 = vmatprep.subr.bf16.mxu0 0
        %1247 = vmatpush1.bf16.msra.mxu0 0
        %1248 = vmatprep.subr.bf16.mxu0 0
        %1249 = vmatpush1.bf16.msra.mxu0 0
        %1250 = vmatprep.subr.bf16.mxu0 0
        %1251 = vmatpush1.bf16.msra.mxu0 0
        %1252 = vmatprep.subr.bf16.mxu0 0
        %1253 = vmatpush1.bf16.msra.mxu0 0
        %1254 = vmatprep.subr.bf16.mxu0 0
        %1255 = vmatpush1.bf16.msra.mxu0 0
        %1256 = vmatprep.mubr.bf16.mxu0 0
        %1257 = vmatmul.mubr.bf16.gmra.mrb[0].mxu0 %v1149
        %v1258 = vpop.f32.mrb[0].mxu0
        %v1259 = vadd.f32 %v1174, %v1258
        %v1260 = vpop.f32.mrb[0].mxu0
        %v1261 = vpop.f32.mrb[0].mxu0
        %v1262 = vadd.f32 %v1174, %v1261
        %v1263 = vpop.f32.mrb[0].mxu0
        %1264 = vmatprep.mubr.bf16.mxu0 0
        %1265 = vmatmul.mubr.bf16.gmra.mrb[0].mxu0 %v1150
        %v1266 = vpop.f32.mrb[0].mxu0
        %v1267 = vadd.f32 %v1174, %v1266
        %v1268 = vpop.f32.mrb[0].mxu0
        %v1269 = vpop.f32.mrb[0].mxu0
        %v1270 = vadd.f32 %v1174, %v1269
        %v1271 = vpop.f32.mrb[0].mxu0
        %1272 = vmatprep.mubr.bf16.mxu0 0
        %1273 = vmatmul.mubr.bf16.gmra.mrb[0].mxu0 %v1151
        %v1274 = vpop.f32.mrb[0].mxu0
        %v1275 = vadd.f32 %v1174, %v1274
        %v1276 = vpop.f32.mrb[0].mxu0
        %v1277 = vpop.f32.mrb[0].mxu0
        %v1278 = vadd.f32 %v1174, %v1277
        %v1279 = vpop.f32.mrb[0].mxu0
        %1280 = vmatprep.mubr.bf16.mxu0 0
        %1281 = vmatmul.mubr.bf16.gmra.mrb[0].mxu0 %v1152
        %v1282 = vpop.f32.mrb[0].mxu0
        %v1283 = vadd.f32 %v1174, %v1282
        %v1284 = vpop.f32.mrb[0].mxu0
        %v1285 = vpop.f32.mrb[0].mxu0
        %v1286 = vadd.f32 %v1174, %v1285
        %v1287 = vpop.f32.mrb[0].mxu0
        %1288 = vdwg.mxu0
        %1289 = vst [vmem:[%s406] sm:$0xff] %v1259
        %1290 = vst [vmem:[%s406 + $0x8] sm:$0xff] %v1262
        %1291 = vst [vmem:[%s406 + $0x10] sm:$0xff] %v1267
        %1292 = vst [vmem:[%s406 + $0x18] sm:$0xff] %v1270
        %1293 = vst [vmem:[%s406 + $0x20] sm:$0xff] %v1275
        %1294 = vst [vmem:[%s406 + $0x28] sm:$0xff] %v1278
        %1295 = vst [vmem:[%s406 + $0x30] sm:$0xff] %v1283
        %1296 = vst [vmem:[%s406 + $0x38] sm:$0xff] %v1286
      $region68: #{drnet_node_embeddings.1} parent=59 // pred_fallthru
        _
      %s1297 = smul.u32 8, %s25
      %p1298 = scmp.lt.s32.totalorder %s1297, 15
      %s1299 = scalar_select %p1298, %s1297, 15
      %s1300 = smul.addr %s1299, 8
      %s1301 = scalar_lea.vmem %s10, %s1300
      // Predicated region
      $region69: #{drnet_node_embeddings.1} parent=59 // pred_check
        %p1302 = pneg %p273
      $region70: #{drnet_node_embeddings.1} parent=59 // pred_check_branch
        %1304 = sbr.rel (%p1302) target = $region72
      $region71: #{drnet_node_embeddings.1} parent=59 // pred_region
        %s1305 = smul.u32 8, %s25
      $region72: #{drnet_node_embeddings.1} parent=59 // pred_fallthru
        _
    $region60: #{drnet_node_embeddings.1} parent=5 // pred_fallthru
      _
    %p1306 = scmp.le.s32.totalorder 2, %s16
    // Predicated region
    $region73: #{drnet_node_embeddings.1} parent=5 // pred_check
      %p1307 = pneg %p1306
    $region74: #{drnet_node_embeddings.1} parent=5 // pred_check_branch
      %1309 = sbr.rel (%p1307) target = $region76
    $region75: #{drnet_node_embeddings.1} parent=5 // pred_region
      %s1310 = ssub.s32 %s16, 2
      // Predicated region
      $region77: #{drnet_node_embeddings.1} parent=75 // pred_check
        %p1311 = pneg %p279
      $region78: #{drnet_node_embeddings.1} parent=75 // pred_check_branch
        %1313 = sbr.rel (%p1311) target = $region80
      $region79: #{drnet_node_embeddings.1} parent=75 // pred_region
        %s1314 = smul.u32 8, %s27
        %p1315 = scmp.lt.s32.totalorder %s1314, 15
        %s1316 = scalar_select %p1315, %s1314, 15
        %s1317 = smul.addr %s1316, 8
        %s1318 = scalar_lea.vmem %s10, %s1317
      $region80: #{drnet_node_embeddings.1} parent=75 // pred_fallthru
        _
    $region76: #{drnet_node_embeddings.1} parent=5 // pred_fallthru
      _
  $region6: #{drnet_node_embeddings.1} parent=0 // loop_footer
    %s20 = sadd.s32 1, %s16
  $region7: #{drnet_node_embeddings.1} parent=0 // loop_footer_branch
    %15 = sbr.rel target = $region3
  $region8: #{drnet_node_embeddings.1} parent=0 // loop_exit
    _

</llo_original>
